<compile_context>
chip_gen: v7x
topology: tpu7x:2x2x1
jax: 0.10.0
libtpu: 0.0.40
codegen_flags: <defaults>
</compile_context>

<pallas_src>
import functools

import jax
import jax.numpy as jnp
from jax.experimental import pallas as pl
from jax.experimental.pallas import tpu as pltpu

IN_FEATURES = 768
HIDDEN1 = 384
HIDDEN2 = 192
HIDDEN2_PAD = 256   # 192 -> 256: lane/MXU aligned
OUT_PAD = 128       # final layer padded to a lane-dense 128-wide output


def _round_up(n, m):
    return ((n + m - 1) // m) * m


def _recsys_binary_kernel(x_ref, w1_ref, b1_ref, w2_ref, b2_ref, w3_ref, b3_ref,
                          out_ref):
    # --- linear1 + relu (bf16 MXU inputs, f32 accumulate) ---
    h1 = jnp.dot(x_ref[...], w1_ref[...], preferred_element_type=jnp.float32)
    h1 = jnp.maximum(h1 + b1_ref[...], 0.0)
    # --- linear2 + relu ---
    h2 = jnp.dot(h1.astype(w2_ref.dtype), w2_ref[...],
                 preferred_element_type=jnp.float32)
    h2 = jnp.maximum(h2 + b2_ref[...], 0.0)
    # --- linear3 (padded to 128 lanes) + sigmoid ---
    logits = jnp.dot(h2.astype(w3_ref.dtype), w3_ref[...],
                     preferred_element_type=jnp.float32) + b3_ref[...]
    # sigmoid(z) = 1 / (1 + exp(-z)); exp -> EUP, reciprocal(approx) -> EUP.
    out_ref[...] = pl.reciprocal(1.0 + jnp.exp(-logits),
                                 approx=True).astype(out_ref.dtype)


@functools.partial(jax.jit, static_argnames=("tb",))
def recsys_binary_forward(x, params, tb=256):
    """x: any shape whose total size is a multiple of 768 (PyTorch view(-1, 768))."""
    w1, b1, w2, b2, w3, b3 = params
    out_size = w3.shape[1]

    x2d = x.reshape(-1, IN_FEATURES)
    batch = x2d.shape[0]

    # Tile sizing: big lane/MXU-friendly tile for large batches, shrink for tiny ones.
    tb = min(tb, _round_up(batch, 8))
    padded_batch = _round_up(batch, tb)
    if padded_batch != batch:
        x2d = jnp.pad(x2d, ((0, padded_batch - batch), (0, 0)))

    # Pad hidden2 (192 -> 256) and the output layer (out_size -> 128) with zeros.
    # relu keeps pad lanes at exactly 0 and w3's pad rows are 0, so real lanes
    # are unchanged; padded output lanes are sliced off below.
    w2p = jnp.pad(w2, ((0, 0), (0, HIDDEN2_PAD - HIDDEN2)))
    b2p = jnp.pad(b2, ((0, 0), (0, HIDDEN2_PAD - HIDDEN2)))
    w3p = jnp.pad(w3, ((0, HIDDEN2_PAD - HIDDEN2), (0, OUT_PAD - out_size)))
    b3p = jnp.pad(b3, ((0, 0), (0, OUT_PAD - out_size)))

    # bf16 MXU inputs, f32 accumulation (biases / elementwise math stay f32).
    x_bf = x2d.astype(jnp.bfloat16)
    w1_bf = w1.astype(jnp.bfloat16)
    w2_bf = w2p.astype(jnp.bfloat16)
    w3_bf = w3p.astype(jnp.bfloat16)

    grid = (padded_batch // tb,)

    def full(i):  # whole-array block for weights / biases (stay VMEM-resident)
        return (0, 0)

    flops = 2 * padded_batch * (IN_FEATURES * HIDDEN1
                                + HIDDEN1 * HIDDEN2_PAD
                                + HIDDEN2_PAD * OUT_PAD)
    bytes_accessed = (padded_batch * IN_FEATURES * 2          # x (bf16)
                      + (IN_FEATURES * HIDDEN1 + HIDDEN1 * HIDDEN2_PAD
                         + HIDDEN2_PAD * OUT_PAD) * 2         # weights (bf16)
                      + (HIDDEN1 + HIDDEN2_PAD + OUT_PAD) * 4  # biases (f32)
                      + padded_batch * OUT_PAD * 4)            # output (f32)

    out = pl.pallas_call(
        _recsys_binary_kernel,
        out_shape=jax.ShapeDtypeStruct((padded_batch, OUT_PAD), jnp.float32),
        grid_spec=pltpu.PrefetchScalarGridSpec(
            num_scalar_prefetch=0,
            grid=grid,
            in_specs=[
                pl.BlockSpec((tb, IN_FEATURES), lambda i: (i, 0)),
                pl.BlockSpec((IN_FEATURES, HIDDEN1), full),
                pl.BlockSpec((1, HIDDEN1), full),
                pl.BlockSpec((HIDDEN1, HIDDEN2_PAD), full),
                pl.BlockSpec((1, HIDDEN2_PAD), full),
                pl.BlockSpec((HIDDEN2_PAD, OUT_PAD), full),
                pl.BlockSpec((1, OUT_PAD), full),
            ],
            out_specs=pl.BlockSpec((tb, OUT_PAD), lambda i: (i, 0)),
        ),
        compiler_params=pltpu.CompilerParams(
            dimension_semantics=("parallel",),
        ),
        cost_estimate=pl.CostEstimate(
            flops=flops,
            transcendentals=padded_batch * OUT_PAD,
            bytes_accessed=bytes_accessed,
        ),
    )(x_bf, w1_bf, b1, w2_bf, b2p, w3_bf, b3p)

    return out[:batch, :out_size]


def init_params(key, output_size):
    """Deterministic init mimicking nn.Linear default (uniform +/- 1/sqrt(fan_in)).

    Weights stored as (in_features, out_features) so the kernel computes x @ W + b
    (equivalent to PyTorch's x @ W_t.T + b).
    """
    def linear(k, fan_in, fan_out):
        k_w, k_b = jax.random.split(k)
        bound = 1.0 / jnp.sqrt(fan_in)
        w = jax.random.uniform(k_w, (fan_in, fan_out), jnp.float32, -bound, bound)
        b = jax.random.uniform(k_b, (1, fan_out), jnp.float32, -bound, bound)
        return w, b

    k1, k2, k3 = jax.random.split(key, 3)
    w1, b1 = linear(k1, IN_FEATURES, HIDDEN1)
    w2, b2 = linear(k2, HIDDEN1, HIDDEN2)
    w3, b3 = linear(k3, HIDDEN2, output_size)
    return (w1, b1, w2, b2, w3, b3)


def reference_forward(x, params):
    """Pure-JAX f32 reference reproducing the PyTorch RecSysBinary forward."""
    w1, b1, w2, b2, w3, b3 = params
    x2d = x.reshape(-1, IN_FEATURES)
    h1 = jax.nn.relu(x2d @ w1 + b1)
    h2 = jax.nn.relu(h1 @ w2 + b2)
    return jax.nn.sigmoid(h2 @ w3 + b3)


if __name__ == "__main__":
    key = jax.random.PRNGKey(0)
    k_x, k_p = jax.random.split(key)

    OUTPUT_SIZE = 16
    # Input shaped (8, 2, 384): view(-1, 768) -> (8, 768), matching the module.
    x = jax.random.normal(k_x, (8, 2, 384), dtype=jnp.float32)
    params = init_params(k_p, OUTPUT_SIZE)

    out = recsys_binary_forward(x, params)
    out = jax.block_until_ready(out)

    ref = reference_forward(x, params)
    assert out.shape == (8, OUTPUT_SIZE)
    # bf16 matmul inputs + approx reciprocal -> relaxed tolerance vs f32 reference.
    assert jnp.allclose(out, ref, atol=2e-2, rtol=2e-2), "mismatch vs reference"
    assert bool(jnp.all((out >= 0.0) & (out <= 1.0))), "sigmoid outputs must be in [0,1]"

    print("KERNEL_OK")
</pallas_src>

<mosaic_0001>
module attributes {stable_mosaic.version = 11 : i64} {
  func.func @_recsys_binary_kernel(%arg0: i32, %arg1: memref<8x768xbf16, #tpu.memory_space<vmem>>, %arg2: memref<768x384xbf16, #tpu.memory_space<vmem>>, %arg3: memref<1x384xf32, #tpu.memory_space<vmem>>, %arg4: memref<384x256xbf16, #tpu.memory_space<vmem>>, %arg5: memref<1x256xf32, #tpu.memory_space<vmem>>, %arg6: memref<256x128xbf16, #tpu.memory_space<vmem>>, %arg7: memref<1x128xf32, #tpu.memory_space<vmem>>, %arg8: memref<8x128xf32, #tpu.memory_space<vmem>>) attributes {dimension_semantics = [#tpu.dimension_semantics<parallel>], iteration_bounds = array<i64: 1>, scalar_prefetch = 0 : i64, scratch_operands = 0 : i64, tpu.core_type = #tpu.core_type<tc>, window_params = [{transform_indices = @transform_0, window_bounds = array<i64: 8, 768>}, {pipeline_mode = #tpu.pipeline_mode<synchronous>, transform_indices = @transform_1, window_bounds = array<i64: 768, 384>}, {pipeline_mode = #tpu.pipeline_mode<synchronous>, transform_indices = @transform_2, window_bounds = array<i64: 1, 384>}, {pipeline_mode = #tpu.pipeline_mode<synchronous>, transform_indices = @transform_3, window_bounds = array<i64: 384, 256>}, {pipeline_mode = #tpu.pipeline_mode<synchronous>, transform_indices = @transform_4, window_bounds = array<i64: 1, 256>}, {pipeline_mode = #tpu.pipeline_mode<synchronous>, transform_indices = @transform_5, window_bounds = array<i64: 256, 128>}, {pipeline_mode = #tpu.pipeline_mode<synchronous>, transform_indices = @transform_6, window_bounds = array<i64: 1, 128>}, {transform_indices = @transform_7, window_bounds = array<i64: 8, 128>}]} {
    %c0 = arith.constant 0 : index
    %c0_0 = arith.constant 0 : index
    %0 = vector.load %arg1[%c0, %c0_0] : memref<8x768xbf16, #tpu.memory_space<vmem>>, vector<8x768xbf16>
    %c0_1 = arith.constant 0 : index
    %c0_2 = arith.constant 0 : index
    %1 = vector.load %arg2[%c0_1, %c0_2] : memref<768x384xbf16, #tpu.memory_space<vmem>>, vector<768x384xbf16>
    %cst = arith.constant dense<0.000000e+00> : vector<8x384xf32>
    %2 = tpu.matmul %0, %1, %cst {dimension_numbers = #tpu.dot_dimension_numbers<[1], [0], [0], [1], [0, 0, 1, 1], [], []>} : vector<8x768xbf16>, vector<768x384xbf16>, vector<8x384xf32> -> vector<8x384xf32>
    %c0_3 = arith.constant 0 : index
    %c0_4 = arith.constant 0 : index
    %3 = vector.load %arg3[%c0_3, %c0_4] : memref<1x384xf32, #tpu.memory_space<vmem>>, vector<1x384xf32>
    %4 = vector.broadcast %3 : vector<1x384xf32> to vector<8x384xf32>
    %5 = arith.addf %2, %4 : vector<8x384xf32>
    %cst_5 = arith.constant 0.000000e+00 : f32
    %6 = vector.broadcast %cst_5 : f32 to vector<8x384xf32>
    %7 = arith.maximumf %5, %6 : vector<8x384xf32>
    %8 = arith.truncf %7 : vector<8x384xf32> to vector<8x384xbf16>
    %c0_6 = arith.constant 0 : index
    %c0_7 = arith.constant 0 : index
    %9 = vector.load %arg4[%c0_6, %c0_7] : memref<384x256xbf16, #tpu.memory_space<vmem>>, vector<384x256xbf16>
    %cst_8 = arith.constant dense<0.000000e+00> : vector<8x256xf32>
    %10 = tpu.matmul %8, %9, %cst_8 {dimension_numbers = #tpu.dot_dimension_numbers<[1], [0], [0], [1], [0, 0, 1, 1], [], []>} : vector<8x384xbf16>, vector<384x256xbf16>, vector<8x256xf32> -> vector<8x256xf32>
    %c0_9 = arith.constant 0 : index
    %c0_10 = arith.constant 0 : index
    %11 = vector.load %arg5[%c0_9, %c0_10] : memref<1x256xf32, #tpu.memory_space<vmem>>, vector<1x256xf32>
    %12 = vector.broadcast %11 : vector<1x256xf32> to vector<8x256xf32>
    %13 = arith.addf %10, %12 : vector<8x256xf32>
    %cst_11 = arith.constant 0.000000e+00 : f32
    %14 = vector.broadcast %cst_11 : f32 to vector<8x256xf32>
    %15 = arith.maximumf %13, %14 : vector<8x256xf32>
    %16 = arith.truncf %15 : vector<8x256xf32> to vector<8x256xbf16>
    %c0_12 = arith.constant 0 : index
    %c0_13 = arith.constant 0 : index
    %17 = vector.load %arg6[%c0_12, %c0_13] : memref<256x128xbf16, #tpu.memory_space<vmem>>, vector<256x128xbf16>
    %cst_14 = arith.constant dense<0.000000e+00> : vector<8x128xf32>
    %18 = tpu.matmul %16, %17, %cst_14 {dimension_numbers = #tpu.dot_dimension_numbers<[1], [0], [0], [1], [0, 0, 1, 1], [], []>} : vector<8x256xbf16>, vector<256x128xbf16>, vector<8x128xf32> -> vector<8x128xf32>
    %c0_15 = arith.constant 0 : index
    %c0_16 = arith.constant 0 : index
    %19 = vector.load %arg7[%c0_15, %c0_16] : memref<1x128xf32, #tpu.memory_space<vmem>>, vector<1x128xf32>
    %20 = vector.broadcast %19 : vector<1x128xf32> to vector<8x128xf32>
    %21 = arith.addf %18, %20 : vector<8x128xf32>
    %cst_17 = arith.constant 0.000000e+00 : f32
    %22 = vector.broadcast %cst_17 : f32 to vector<8x128xf32>
    %23 = arith.subf %22, %21 : vector<8x128xf32>
    %24 = math.exp %23 : vector<8x128xf32>
    %cst_18 = arith.constant 1.000000e+00 : f32
    %25 = vector.broadcast %cst_18 : f32 to vector<8x128xf32>
    %26 = arith.addf %25, %24 : vector<8x128xf32>
    %27 = tpu.reciprocal %26 {approx = true} : vector<8x128xf32> -> vector<8x128xf32>
    %c0_19 = arith.constant 0 : index
    %c0_20 = arith.constant 0 : index
    %28 = vector.load %arg8[%c0_19, %c0_20] : memref<8x128xf32, #tpu.memory_space<vmem>>, vector<8x128xf32>
    tpu.vector_store %arg8[%c0_19, %c0_20], %27 {strides = array<i32>} : memref<8x128xf32, #tpu.memory_space<vmem>>, vector<8x128xf32>,
    return
  }
  func.func @transform_0(%arg0: i32) -> (i32, i32) {
    %c0_i32 = arith.constant 0 : i32
    %c0_i32_0 = arith.constant 0 : i32
    return %arg0, %c0_i32 : i32, i32
  }
  func.func @transform_1(%arg0: i32) -> (i32, i32) {
    %c0_i32 = arith.constant 0 : i32
    %c0_i32_0 = arith.constant 0 : i32
    %c0_i32_1 = arith.constant 0 : i32
    return %c0_i32, %c0_i32_0 : i32, i32
  }
  func.func @transform_2(%arg0: i32) -> (i32, i32) {
    %c0_i32 = arith.constant 0 : i32
    %c0_i32_0 = arith.constant 0 : i32
    %c0_i32_1 = arith.constant 0 : i32
    return %c0_i32, %c0_i32_0 : i32, i32
  }
  func.func @transform_3(%arg0: i32) -> (i32, i32) {
    %c0_i32 = arith.constant 0 : i32
    %c0_i32_0 = arith.constant 0 : i32
    %c0_i32_1 = arith.constant 0 : i32
    return %c0_i32, %c0_i32_0 : i32, i32
  }
  func.func @transform_4(%arg0: i32) -> (i32, i32) {
    %c0_i32 = arith.constant 0 : i32
    %c0_i32_0 = arith.constant 0 : i32
    %c0_i32_1 = arith.constant 0 : i32
    return %c0_i32, %c0_i32_0 : i32, i32
  }
  func.func @transform_5(%arg0: i32) -> (i32, i32) {
    %c0_i32 = arith.constant 0 : i32
    %c0_i32_0 = arith.constant 0 : i32
    %c0_i32_1 = arith.constant 0 : i32
    return %c0_i32, %c0_i32_0 : i32, i32
  }
  func.func @transform_6(%arg0: i32) -> (i32, i32) {
    %c0_i32 = arith.constant 0 : i32
    %c0_i32_0 = arith.constant 0 : i32
    %c0_i32_1 = arith.constant 0 : i32
    return %c0_i32, %c0_i32_0 : i32, i32
  }
  func.func @transform_7(%arg0: i32) -> (i32, i32) {
    %c0_i32 = arith.constant 0 : i32
    %c0_i32_0 = arith.constant 0 : i32
    return %arg0, %c0_i32 : i32, i32
  }
}

</mosaic_0001>

<llo_original>
// kernel: recsys_binary_forward.1
$region0: #{recsys_binary_forward.1}
  #allocation0 [shape = 'u32[]', space=smem, size = 0x4, offset = 0x4, fixed_abs, tag = 'smem constant byte address 0x4 - core index']
  #allocation1 [shape = 'u32[144,128]{1,0:T(1,128)}', space=vmem, size = 0x12000, scoped, tag = 'internal scratch']
  %s0 = inlined_call_operand.vmem [shape: bf16[8,768], index: 0, kind: input, shape index: {}]
  %s1 = inlined_call_operand.vmem [shape: bf16[768,384], index: 1, kind: input, shape index: {}]
  %s2 = inlined_call_operand.vmem [shape: f32[1,384], index: 2, kind: input, shape index: {}]
  %s3 = inlined_call_operand.vmem [shape: bf16[384,256], index: 3, kind: input, shape index: {}]
  %s4 = inlined_call_operand.vmem [shape: f32[1,256], index: 4, kind: input, shape index: {}]
  %s5 = inlined_call_operand.vmem [shape: bf16[256,128], index: 5, kind: input, shape index: {}]
  %s6 = inlined_call_operand.vmem [shape: f32[1,128], index: 6, kind: input, shape index: {}]
  %s7 = inlined_call_operand.hbm [shape: f32[8,128], index: 7, kind: output, shape index: {}]
  %s8 = sld [smem:[#allocation0]]
  $region38: #{recsys_binary_forward.1} parent=0
    _
  %s10 = ssub.s32 1, %s8
  %s11 = scalar_select 0, %s10, %s8
  $region1: #{recsys_binary_forward.1} parent=0
    #allocation2 [shape = 'u8[4096]{0}', space=vmem, size = 0x1000, scoped, tag = 'output window, operand 0, single buffered']
    #allocation3 [shape = 's32[1]{0}', space=sflag, size = 0x4, scoped, tag = 'scoped memory for recsys_binary_forward.1']
    %12 = vsyncpa [#allocation3], 0
    // Predicated region
    $region2: #{recsys_binary_forward.1} parent=1 // pred_check
      _
    $region3: #{recsys_binary_forward.1} parent=1 // pred_check_branch
      %14 = sbr.rel (0) target = $region5
    $region4: #{recsys_binary_forward.1} parent=1 // pred_region
      _
    $region5: #{recsys_binary_forward.1} parent=1 // pred_fallthru
      _
    // Predicated region
    $region6: #{recsys_binary_forward.1} parent=1 // pred_check
      _
    $region7: #{recsys_binary_forward.1} parent=1 // pred_check_branch
      %16 = sbr.rel (0) target = $region9
    $region8: #{recsys_binary_forward.1} parent=1 // pred_region
      _
    $region9: #{recsys_binary_forward.1} parent=1 // pred_fallthru
      _
    // Predicated region
    $region10: #{recsys_binary_forward.1} parent=1 // pred_check
      _
    $region11: #{recsys_binary_forward.1} parent=1 // pred_check_branch
      %18 = sbr.rel (0) target = $region13
    $region12: #{recsys_binary_forward.1} parent=1 // pred_region
      _
    $region13: #{recsys_binary_forward.1} parent=1 // pred_fallthru
      _
    // Predicated region
    $region14: #{recsys_binary_forward.1} parent=1 // pred_check
      _
    $region15: #{recsys_binary_forward.1} parent=1 // pred_check_branch
      %20 = sbr.rel (0) target = $region17
    $region16: #{recsys_binary_forward.1} parent=1 // pred_region
      _
    $region17: #{recsys_binary_forward.1} parent=1 // pred_fallthru
      _
    // Predicated region
    $region18: #{recsys_binary_forward.1} parent=1 // pred_check
      _
    $region19: #{recsys_binary_forward.1} parent=1 // pred_check_branch
      %22 = sbr.rel (0) target = $region21
    $region20: #{recsys_binary_forward.1} parent=1 // pred_region
      _
    $region21: #{recsys_binary_forward.1} parent=1 // pred_fallthru
      _
    // Predicated region
    $region22: #{recsys_binary_forward.1} parent=1 // pred_check
      _
    $region23: #{recsys_binary_forward.1} parent=1 // pred_check_branch
      %24 = sbr.rel (0) target = $region25
    $region24: #{recsys_binary_forward.1} parent=1 // pred_region
      _
    $region25: #{recsys_binary_forward.1} parent=1 // pred_fallthru
      _
    // Predicated region
    $region26: #{recsys_binary_forward.1} parent=1 // pred_check
      _
    $region27: #{recsys_binary_forward.1} parent=1 // pred_check_branch
      %26 = sbr.rel (0) target = $region29
    $region28: #{recsys_binary_forward.1} parent=1 // pred_region
      _
    $region29: #{recsys_binary_forward.1} parent=1 // pred_fallthru
      _
    %v28 = vld [vmem:[%s0] sm:$0xff]
    %v29 = vld [vmem:[%s0 + $0x8] sm:$0xff]
    %v30 = vld [vmem:[%s0 + $0x10] sm:$0xff]
    %v31 = vld [vmem:[%s1] sm:$0xff]
    %v32 = vld [vmem:[%s1 + $0x8] sm:$0xf]
    %v33 = vld [vmem:[%s1 + $0xc] sm:$0xff]
    %v34 = vld [vmem:[%s1 + $0x14] sm:$0xf]
    %v35 = vld [vmem:[%s1 + $0x18] sm:$0xff]
    %v36 = vld [vmem:[%s1 + $0x20] sm:$0xf]
    %v37 = vld [vmem:[%s1 + $0x24] sm:$0xff]
    %v38 = vld [vmem:[%s1 + $0x2c] sm:$0xf]
    %v39 = vld [vmem:[%s1 + $0x30] sm:$0xff]
    %v40 = vld [vmem:[%s1 + $0x38] sm:$0xf]
    %v41 = vld [vmem:[%s1 + $0x3c] sm:$0xff]
    %v42 = vld [vmem:[%s1 + $0x44] sm:$0xf]
    %v43 = vld [vmem:[%s1 + $0x48] sm:$0xff]
    %v44 = vld [vmem:[%s1 + $0x50] sm:$0xf]
    %v45 = vld [vmem:[%s1 + $0x54] sm:$0xff]
    %v46 = vld [vmem:[%s1 + $0x5c] sm:$0xf]
    %v47 = vld [vmem:[%s1 + $0x60] sm:$0xff]
    %v48 = vld [vmem:[%s1 + $0x68] sm:$0xf]
    %v49 = vld [vmem:[%s1 + $0x6c] sm:$0xff]
    %v50 = vld [vmem:[%s1 + $0x74] sm:$0xf]
    %v51 = vld [vmem:[%s1 + $0x78] sm:$0xff]
    %v52 = vld [vmem:[%s1 + $0x80] sm:$0xf]
    %v53 = vld [vmem:[%s1 + $0x84] sm:$0xff]
    %v54 = vld [vmem:[%s1 + $0x8c] sm:$0xf]
    %v55 = vld [vmem:[%s1 + $0x90] sm:$0xff]
    %v56 = vld [vmem:[%s1 + $0x98] sm:$0xf]
    %v57 = vld [vmem:[%s1 + $0x9c] sm:$0xff]
    %v58 = vld [vmem:[%s1 + $0xa4] sm:$0xf]
    %v59 = vld [vmem:[%s1 + $0xa8] sm:$0xff]
    %v60 = vld [vmem:[%s1 + $0xb0] sm:$0xf]
    %v61 = vld [vmem:[%s1 + $0xb4] sm:$0xff]
    %v62 = vld [vmem:[%s1 + $0xbc] sm:$0xf]
    %v63 = vld [vmem:[%s1 + $0xc0] sm:$0xff]
    %v64 = vld [vmem:[%s1 + $0xc8] sm:$0xf]
    %v65 = vld [vmem:[%s1 + $0xcc] sm:$0xff]
    %v66 = vld [vmem:[%s1 + $0xd4] sm:$0xf]
    %v67 = vld [vmem:[%s1 + $0xd8] sm:$0xff]
    %v68 = vld [vmem:[%s1 + $0xe0] sm:$0xf]
    %v69 = vld [vmem:[%s1 + $0xe4] sm:$0xff]
    %v70 = vld [vmem:[%s1 + $0xec] sm:$0xf]
    %v71 = vld [vmem:[%s1 + $0xf0] sm:$0xff]
    %v72 = vld [vmem:[%s1 + $0xf8] sm:$0xf]
    %v73 = vld [vmem:[%s1 + $0xfc] sm:$0xff]
    %v74 = vld [vmem:[%s1 + $0x104] sm:$0xf]
    %v75 = vld [vmem:[%s1 + $0x108] sm:$0xff]
    %v76 = vld [vmem:[%s1 + $0x110] sm:$0xf]
    %v77 = vld [vmem:[%s1 + $0x114] sm:$0xff]
    %v78 = vld [vmem:[%s1 + $0x11c] sm:$0xf]
    %v79 = vld [vmem:[%s1 + $0x120] sm:$0xff]
    %v80 = vld [vmem:[%s1 + $0x128] sm:$0xf]
    %v81 = vld [vmem:[%s1 + $0x12c] sm:$0xff]
    %v82 = vld [vmem:[%s1 + $0x134] sm:$0xf]
    %v83 = vld [vmem:[%s1 + $0x138] sm:$0xff]
    %v84 = vld [vmem:[%s1 + $0x140] sm:$0xf]
    %v85 = vld [vmem:[%s1 + $0x144] sm:$0xff]
    %v86 = vld [vmem:[%s1 + $0x14c] sm:$0xf]
    %v87 = vld [vmem:[%s1 + $0x150] sm:$0xff]
    %v88 = vld [vmem:[%s1 + $0x158] sm:$0xf]
    %v89 = vld [vmem:[%s1 + $0x15c] sm:$0xff]
    %v90 = vld [vmem:[%s1 + $0x164] sm:$0xf]
    %v91 = vld [vmem:[%s1 + $0x168] sm:$0xff]
    %v92 = vld [vmem:[%s1 + $0x170] sm:$0xf]
    %v93 = vld [vmem:[%s1 + $0x174] sm:$0xff]
    %v94 = vld [vmem:[%s1 + $0x17c] sm:$0xf]
    %v95 = vld [vmem:[%s1 + $0x180] sm:$0xff]
    %v96 = vld [vmem:[%s1 + $0x188] sm:$0xf]
    %v97 = vld [vmem:[%s1 + $0x18c] sm:$0xff]
    %v98 = vld [vmem:[%s1 + $0x194] sm:$0xf]
    %v99 = vld [vmem:[%s1 + $0x198] sm:$0xff]
    %v100 = vld [vmem:[%s1 + $0x1a0] sm:$0xf]
    %v101 = vld [vmem:[%s1 + $0x1a4] sm:$0xff]
    %v102 = vld [vmem:[%s1 + $0x1ac] sm:$0xf]
    %v103 = vld [vmem:[%s1 + $0x1b0] sm:$0xff]
    %v104 = vld [vmem:[%s1 + $0x1b8] sm:$0xf]
    %v105 = vld [vmem:[%s1 + $0x1bc] sm:$0xff]
    %v106 = vld [vmem:[%s1 + $0x1c4] sm:$0xf]
    %v107 = vld [vmem:[%s1 + $0x1c8] sm:$0xff]
    %v108 = vld [vmem:[%s1 + $0x1d0] sm:$0xf]
    %v109 = vld [vmem:[%s1 + $0x1d4] sm:$0xff]
    %v110 = vld [vmem:[%s1 + $0x1dc] sm:$0xf]
    %v111 = vld [vmem:[%s1 + $0x1e0] sm:$0xff]
    %v112 = vld [vmem:[%s1 + $0x1e8] sm:$0xf]
    %v113 = vld [vmem:[%s1 + $0x1ec] sm:$0xff]
    %v114 = vld [vmem:[%s1 + $0x1f4] sm:$0xf]
    %v115 = vld [vmem:[%s1 + $0x1f8] sm:$0xff]
    %v116 = vld [vmem:[%s1 + $0x200] sm:$0xf]
    %v117 = vld [vmem:[%s1 + $0x204] sm:$0xff]
    %v118 = vld [vmem:[%s1 + $0x20c] sm:$0xf]
    %v119 = vld [vmem:[%s1 + $0x210] sm:$0xff]
    %v120 = vld [vmem:[%s1 + $0x218] sm:$0xf]
    %v121 = vld [vmem:[%s1 + $0x21c] sm:$0xff]
    %v122 = vld [vmem:[%s1 + $0x224] sm:$0xf]
    %v123 = vld [vmem:[%s1 + $0x228] sm:$0xff]
    %v124 = vld [vmem:[%s1 + $0x230] sm:$0xf]
    %v125 = vld [vmem:[%s1 + $0x234] sm:$0xff]
    %v126 = vld [vmem:[%s1 + $0x23c] sm:$0xf]
    %v127 = vld [vmem:[%s1 + $0x240] sm:$0xff]
    %v128 = vld [vmem:[%s1 + $0x248] sm:$0xf]
    %v129 = vld [vmem:[%s1 + $0x24c] sm:$0xff]
    %v130 = vld [vmem:[%s1 + $0x254] sm:$0xf]
    %v131 = vld [vmem:[%s1 + $0x258] sm:$0xff]
    %v132 = vld [vmem:[%s1 + $0x260] sm:$0xf]
    %v133 = vld [vmem:[%s1 + $0x264] sm:$0xff]
    %v134 = vld [vmem:[%s1 + $0x26c] sm:$0xf]
    %v135 = vld [vmem:[%s1 + $0x270] sm:$0xff]
    %v136 = vld [vmem:[%s1 + $0x278] sm:$0xf]
    %v137 = vld [vmem:[%s1 + $0x27c] sm:$0xff]
    %v138 = vld [vmem:[%s1 + $0x284] sm:$0xf]
    %v139 = vld [vmem:[%s1 + $0x288] sm:$0xff]
    %v140 = vld [vmem:[%s1 + $0x290] sm:$0xf]
    %v141 = vld [vmem:[%s1 + $0x294] sm:$0xff]
    %v142 = vld [vmem:[%s1 + $0x29c] sm:$0xf]
    %v143 = vld [vmem:[%s1 + $0x2a0] sm:$0xff]
    %v144 = vld [vmem:[%s1 + $0x2a8] sm:$0xf]
    %v145 = vld [vmem:[%s1 + $0x2ac] sm:$0xff]
    %v146 = vld [vmem:[%s1 + $0x2b4] sm:$0xf]
    %v147 = vld [vmem:[%s1 + $0x2b8] sm:$0xff]
    %v148 = vld [vmem:[%s1 + $0x2c0] sm:$0xf]
    %v149 = vld [vmem:[%s1 + $0x2c4] sm:$0xff]
    %v150 = vld [vmem:[%s1 + $0x2cc] sm:$0xf]
    %v151 = vld [vmem:[%s1 + $0x2d0] sm:$0xff]
    %v152 = vld [vmem:[%s1 + $0x2d8] sm:$0xf]
    %v153 = vld [vmem:[%s1 + $0x2dc] sm:$0xff]
    %v154 = vld [vmem:[%s1 + $0x2e4] sm:$0xf]
    %v155 = vld [vmem:[%s1 + $0x2e8] sm:$0xff]
    %v156 = vld [vmem:[%s1 + $0x2f0] sm:$0xf]
    %v157 = vld [vmem:[%s1 + $0x2f4] sm:$0xff]
    %v158 = vld [vmem:[%s1 + $0x2fc] sm:$0xf]
    %v159 = vld [vmem:[%s1 + $0x300] sm:$0xff]
    %v160 = vld [vmem:[%s1 + $0x308] sm:$0xf]
    %v161 = vld [vmem:[%s1 + $0x30c] sm:$0xff]
    %v162 = vld [vmem:[%s1 + $0x314] sm:$0xf]
    %v163 = vld [vmem:[%s1 + $0x318] sm:$0xff]
    %v164 = vld [vmem:[%s1 + $0x320] sm:$0xf]
    %v165 = vld [vmem:[%s1 + $0x324] sm:$0xff]
    %v166 = vld [vmem:[%s1 + $0x32c] sm:$0xf]
    %v167 = vld [vmem:[%s1 + $0x330] sm:$0xff]
    %v168 = vld [vmem:[%s1 + $0x338] sm:$0xf]
    %v169 = vld [vmem:[%s1 + $0x33c] sm:$0xff]
    %v170 = vld [vmem:[%s1 + $0x344] sm:$0xf]
    %v171 = vld [vmem:[%s1 + $0x348] sm:$0xff]
    %v172 = vld [vmem:[%s1 + $0x350] sm:$0xf]
    %v173 = vld [vmem:[%s1 + $0x354] sm:$0xff]
    %v174 = vld [vmem:[%s1 + $0x35c] sm:$0xf]
    %v175 = vld [vmem:[%s1 + $0x360] sm:$0xff]
    %v176 = vld [vmem:[%s1 + $0x368] sm:$0xf]
    %v177 = vld [vmem:[%s1 + $0x36c] sm:$0xff]
    %v178 = vld [vmem:[%s1 + $0x374] sm:$0xf]
    %v179 = vld [vmem:[%s1 + $0x378] sm:$0xff]
    %v180 = vld [vmem:[%s1 + $0x380] sm:$0xf]
    %v181 = vld [vmem:[%s1 + $0x384] sm:$0xff]
    %v182 = vld [vmem:[%s1 + $0x38c] sm:$0xf]
    %v183 = vld [vmem:[%s1 + $0x390] sm:$0xff]
    %v184 = vld [vmem:[%s1 + $0x398] sm:$0xf]
    %v185 = vld [vmem:[%s1 + $0x39c] sm:$0xff]
    %v186 = vld [vmem:[%s1 + $0x3a4] sm:$0xf]
    %v187 = vld [vmem:[%s1 + $0x3a8] sm:$0xff]
    %v188 = vld [vmem:[%s1 + $0x3b0] sm:$0xf]
    %v189 = vld [vmem:[%s1 + $0x3b4] sm:$0xff]
    %v190 = vld [vmem:[%s1 + $0x3bc] sm:$0xf]
    %v191 = vld [vmem:[%s1 + $0x3c0] sm:$0xff]
    %v192 = vld [vmem:[%s1 + $0x3c8] sm:$0xf]
    %v193 = vld [vmem:[%s1 + $0x3cc] sm:$0xff]
    %v194 = vld [vmem:[%s1 + $0x3d4] sm:$0xf]
    %v195 = vld [vmem:[%s1 + $0x3d8] sm:$0xff]
    %v196 = vld [vmem:[%s1 + $0x3e0] sm:$0xf]
    %v197 = vld [vmem:[%s1 + $0x3e4] sm:$0xff]
    %v198 = vld [vmem:[%s1 + $0x3ec] sm:$0xf]
    %v199 = vld [vmem:[%s1 + $0x3f0] sm:$0xff]
    %v200 = vld [vmem:[%s1 + $0x3f8] sm:$0xf]
    %v201 = vld [vmem:[%s1 + $0x3fc] sm:$0xff]
    %v202 = vld [vmem:[%s1 + $0x404] sm:$0xf]
    %v203 = vld [vmem:[%s1 + $0x408] sm:$0xff]
    %v204 = vld [vmem:[%s1 + $0x410] sm:$0xf]
    %v205 = vld [vmem:[%s1 + $0x414] sm:$0xff]
    %v206 = vld [vmem:[%s1 + $0x41c] sm:$0xf]
    %v207 = vld [vmem:[%s1 + $0x420] sm:$0xff]
    %v208 = vld [vmem:[%s1 + $0x428] sm:$0xf]
    %v209 = vld [vmem:[%s1 + $0x42c] sm:$0xff]
    %v210 = vld [vmem:[%s1 + $0x434] sm:$0xf]
    %v211 = vld [vmem:[%s1 + $0x438] sm:$0xff]
    %v212 = vld [vmem:[%s1 + $0x440] sm:$0xf]
    %v213 = vld [vmem:[%s1 + $0x444] sm:$0xff]
    %v214 = vld [vmem:[%s1 + $0x44c] sm:$0xf]
    %v215 = vld [vmem:[%s1 + $0x450] sm:$0xff]
    %v216 = vld [vmem:[%s1 + $0x458] sm:$0xf]
    %v217 = vld [vmem:[%s1 + $0x45c] sm:$0xff]
    %v218 = vld [vmem:[%s1 + $0x464] sm:$0xf]
    %v219 = vld [vmem:[%s1 + $0x468] sm:$0xff]
    %v220 = vld [vmem:[%s1 + $0x470] sm:$0xf]
    %v221 = vld [vmem:[%s1 + $0x474] sm:$0xff]
    %v222 = vld [vmem:[%s1 + $0x47c] sm:$0xf]
    %v223 = vld [vmem:[%s2] sm:$0x7]
    %v225 = vlaneseq
    %v226 = vshrl.u32 %v225, 7
    %v227 = vsub.s32 0, %v226
    %v228 = vrot.slane %v223, %v227
    %v229 = vlaneseq
    %v230 = vshrl.u32 %v229, 7
    %v231 = vsub.s32 1, %v230
    %v232 = vrot.slane %v223, %v231
    %v233 = vlaneseq
    %v234 = vshrl.u32 %v233, 7
    %v235 = vsub.s32 2, %v234
    %v236 = vrot.slane %v223, %v235
    %v243 = vunpack.c.l.b16 %v28
    %v244 = vunpack.c.h.b16 %v28
    %v245 = vunpack.c.l.b16 %v29
    %v246 = vunpack.c.h.b16 %v29
    %v247 = vunpack.c.l.b16 %v30
    %v248 = vunpack.c.h.b16 %v30
    %v249 = vpack.c.b16 %v243, %v243
    %v250 = vpack.c.b16 %v244, %v244
    %v251 = vpack.c.b16 %v245, %v245
    %v252 = vpack.c.b16 %v246, %v246
    %v253 = vpack.c.b16 %v247, %v247
    %v254 = vpack.c.b16 %v248, %v248
    %v453 = vunpack.c.l.b16 %v31
    %v454 = vunpack.c.h.b16 %v31
    %v455 = vunpack.c.l.b16 %v32
    %v456 = vunpack.c.l.b16 %v33
    %v457 = vunpack.c.h.b16 %v33
    %v458 = vunpack.c.l.b16 %v34
    %v459 = vunpack.c.l.b16 %v35
    %v460 = vunpack.c.h.b16 %v35
    %v461 = vunpack.c.l.b16 %v36
    %v462 = vunpack.c.l.b16 %v37
    %v463 = vunpack.c.h.b16 %v37
    %v464 = vunpack.c.l.b16 %v38
    %v465 = vunpack.c.l.b16 %v39
    %v466 = vunpack.c.h.b16 %v39
    %v467 = vunpack.c.l.b16 %v40
    %v468 = vunpack.c.l.b16 %v41
    %v469 = vunpack.c.h.b16 %v41
    %v470 = vunpack.c.l.b16 %v42
    %v471 = vunpack.c.l.b16 %v43
    %v472 = vunpack.c.h.b16 %v43
    %v473 = vunpack.c.l.b16 %v44
    %v474 = vunpack.c.l.b16 %v45
    %v475 = vunpack.c.h.b16 %v45
    %v476 = vunpack.c.l.b16 %v46
    %v477 = vunpack.c.l.b16 %v47
    %v478 = vunpack.c.h.b16 %v47
    %v479 = vunpack.c.l.b16 %v48
    %v480 = vunpack.c.l.b16 %v49
    %v481 = vunpack.c.h.b16 %v49
    %v482 = vunpack.c.l.b16 %v50
    %v483 = vunpack.c.l.b16 %v51
    %v484 = vunpack.c.h.b16 %v51
    %v485 = vunpack.c.l.b16 %v52
    %v486 = vunpack.c.l.b16 %v53
    %v487 = vunpack.c.h.b16 %v53
    %v488 = vunpack.c.l.b16 %v54
    %v489 = vunpack.c.l.b16 %v55
    %v490 = vunpack.c.h.b16 %v55
    %v491 = vunpack.c.l.b16 %v56
    %v492 = vunpack.c.l.b16 %v57
    %v493 = vunpack.c.h.b16 %v57
    %v494 = vunpack.c.l.b16 %v58
    %v495 = vunpack.c.l.b16 %v59
    %v496 = vunpack.c.h.b16 %v59
    %v497 = vunpack.c.l.b16 %v60
    %v498 = vunpack.c.l.b16 %v61
    %v499 = vunpack.c.h.b16 %v61
    %v500 = vunpack.c.l.b16 %v62
    %v501 = vunpack.c.l.b16 %v63
    %v502 = vunpack.c.h.b16 %v63
    %v503 = vunpack.c.l.b16 %v64
    %v504 = vunpack.c.l.b16 %v65
    %v505 = vunpack.c.h.b16 %v65
    %v506 = vunpack.c.l.b16 %v66
    %v507 = vunpack.c.l.b16 %v67
    %v508 = vunpack.c.h.b16 %v67
    %v509 = vunpack.c.l.b16 %v68
    %v510 = vunpack.c.l.b16 %v69
    %v511 = vunpack.c.h.b16 %v69
    %v512 = vunpack.c.l.b16 %v70
    %v513 = vunpack.c.l.b16 %v71
    %v514 = vunpack.c.h.b16 %v71
    %v515 = vunpack.c.l.b16 %v72
    %v516 = vunpack.c.l.b16 %v73
    %v517 = vunpack.c.h.b16 %v73
    %v518 = vunpack.c.l.b16 %v74
    %v519 = vunpack.c.l.b16 %v75
    %v520 = vunpack.c.h.b16 %v75
    %v521 = vunpack.c.l.b16 %v76
    %v522 = vunpack.c.l.b16 %v77
    %v523 = vunpack.c.h.b16 %v77
    %v524 = vunpack.c.l.b16 %v78
    %v525 = vunpack.c.l.b16 %v79
    %v526 = vunpack.c.h.b16 %v79
    %v527 = vunpack.c.l.b16 %v80
    %v528 = vunpack.c.l.b16 %v81
    %v529 = vunpack.c.h.b16 %v81
    %v530 = vunpack.c.l.b16 %v82
    %v531 = vunpack.c.l.b16 %v83
    %v532 = vunpack.c.h.b16 %v83
    %v533 = vunpack.c.l.b16 %v84
    %v534 = vunpack.c.l.b16 %v85
    %v535 = vunpack.c.h.b16 %v85
    %v536 = vunpack.c.l.b16 %v86
    %v537 = vunpack.c.l.b16 %v87
    %v538 = vunpack.c.h.b16 %v87
    %v539 = vunpack.c.l.b16 %v88
    %v540 = vunpack.c.l.b16 %v89
    %v541 = vunpack.c.h.b16 %v89
    %v542 = vunpack.c.l.b16 %v90
    %v543 = vunpack.c.l.b16 %v91
    %v544 = vunpack.c.h.b16 %v91
    %v545 = vunpack.c.l.b16 %v92
    %v546 = vunpack.c.l.b16 %v93
    %v547 = vunpack.c.h.b16 %v93
    %v548 = vunpack.c.l.b16 %v94
    %v549 = vunpack.c.l.b16 %v95
    %v550 = vunpack.c.h.b16 %v95
    %v551 = vunpack.c.l.b16 %v96
    %v552 = vunpack.c.l.b16 %v97
    %v553 = vunpack.c.h.b16 %v97
    %v554 = vunpack.c.l.b16 %v98
    %v555 = vunpack.c.l.b16 %v99
    %v556 = vunpack.c.h.b16 %v99
    %v557 = vunpack.c.l.b16 %v100
    %v558 = vunpack.c.l.b16 %v101
    %v559 = vunpack.c.h.b16 %v101
    %v560 = vunpack.c.l.b16 %v102
    %v561 = vunpack.c.l.b16 %v103
    %v562 = vunpack.c.h.b16 %v103
    %v563 = vunpack.c.l.b16 %v104
    %v564 = vunpack.c.l.b16 %v105
    %v565 = vunpack.c.h.b16 %v105
    %v566 = vunpack.c.l.b16 %v106
    %v567 = vunpack.c.l.b16 %v107
    %v568 = vunpack.c.h.b16 %v107
    %v569 = vunpack.c.l.b16 %v108
    %v570 = vunpack.c.l.b16 %v109
    %v571 = vunpack.c.h.b16 %v109
    %v572 = vunpack.c.l.b16 %v110
    %v573 = vunpack.c.l.b16 %v111
    %v574 = vunpack.c.h.b16 %v111
    %v575 = vunpack.c.l.b16 %v112
    %v576 = vunpack.c.l.b16 %v113
    %v577 = vunpack.c.h.b16 %v113
    %v578 = vunpack.c.l.b16 %v114
    %v579 = vunpack.c.l.b16 %v115
    %v580 = vunpack.c.h.b16 %v115
    %v581 = vunpack.c.l.b16 %v116
    %v582 = vunpack.c.l.b16 %v117
    %v583 = vunpack.c.h.b16 %v117
    %v584 = vunpack.c.l.b16 %v118
    %v585 = vunpack.c.l.b16 %v119
    %v586 = vunpack.c.h.b16 %v119
    %v587 = vunpack.c.l.b16 %v120
    %v588 = vunpack.c.l.b16 %v121
    %v589 = vunpack.c.h.b16 %v121
    %v590 = vunpack.c.l.b16 %v122
    %v591 = vunpack.c.l.b16 %v123
    %v592 = vunpack.c.h.b16 %v123
    %v593 = vunpack.c.l.b16 %v124
    %v594 = vunpack.c.l.b16 %v125
    %v595 = vunpack.c.h.b16 %v125
    %v596 = vunpack.c.l.b16 %v126
    %v597 = vunpack.c.l.b16 %v127
    %v598 = vunpack.c.h.b16 %v127
    %v599 = vunpack.c.l.b16 %v128
    %v600 = vunpack.c.l.b16 %v129
    %v601 = vunpack.c.h.b16 %v129
    %v602 = vunpack.c.l.b16 %v130
    %v603 = vunpack.c.l.b16 %v131
    %v604 = vunpack.c.h.b16 %v131
    %v605 = vunpack.c.l.b16 %v132
    %v606 = vunpack.c.l.b16 %v133
    %v607 = vunpack.c.h.b16 %v133
    %v608 = vunpack.c.l.b16 %v134
    %v609 = vunpack.c.l.b16 %v135
    %v610 = vunpack.c.h.b16 %v135
    %v611 = vunpack.c.l.b16 %v136
    %v612 = vunpack.c.l.b16 %v137
    %v613 = vunpack.c.h.b16 %v137
    %v614 = vunpack.c.l.b16 %v138
    %v615 = vunpack.c.l.b16 %v139
    %v616 = vunpack.c.h.b16 %v139
    %v617 = vunpack.c.l.b16 %v140
    %v618 = vunpack.c.l.b16 %v141
    %v619 = vunpack.c.h.b16 %v141
    %v620 = vunpack.c.l.b16 %v142
    %v621 = vunpack.c.l.b16 %v143
    %v622 = vunpack.c.h.b16 %v143
    %v623 = vunpack.c.l.b16 %v144
    %v624 = vunpack.c.l.b16 %v145
    %v625 = vunpack.c.h.b16 %v145
    %v626 = vunpack.c.l.b16 %v146
    %v627 = vunpack.c.l.b16 %v147
    %v628 = vunpack.c.h.b16 %v147
    %v629 = vunpack.c.l.b16 %v148
    %v630 = vunpack.c.l.b16 %v149
    %v631 = vunpack.c.h.b16 %v149
    %v632 = vunpack.c.l.b16 %v150
    %v633 = vunpack.c.l.b16 %v151
    %v634 = vunpack.c.h.b16 %v151
    %v635 = vunpack.c.l.b16 %v152
    %v636 = vunpack.c.l.b16 %v153
    %v637 = vunpack.c.h.b16 %v153
    %v638 = vunpack.c.l.b16 %v154
    %v639 = vunpack.c.l.b16 %v155
    %v640 = vunpack.c.h.b16 %v155
    %v641 = vunpack.c.l.b16 %v156
    %v642 = vunpack.c.l.b16 %v157
    %v643 = vunpack.c.h.b16 %v157
    %v644 = vunpack.c.l.b16 %v158
    %v645 = vunpack.c.l.b16 %v159
    %v646 = vunpack.c.h.b16 %v159
    %v647 = vunpack.c.l.b16 %v160
    %v648 = vunpack.c.l.b16 %v161
    %v649 = vunpack.c.h.b16 %v161
    %v650 = vunpack.c.l.b16 %v162
    %v651 = vunpack.c.l.b16 %v163
    %v652 = vunpack.c.h.b16 %v163
    %v653 = vunpack.c.l.b16 %v164
    %v654 = vunpack.c.l.b16 %v165
    %v655 = vunpack.c.h.b16 %v165
    %v656 = vunpack.c.l.b16 %v166
    %v657 = vunpack.c.l.b16 %v167
    %v658 = vunpack.c.h.b16 %v167
    %v659 = vunpack.c.l.b16 %v168
    %v660 = vunpack.c.l.b16 %v169
    %v661 = vunpack.c.h.b16 %v169
    %v662 = vunpack.c.l.b16 %v170
    %v663 = vunpack.c.l.b16 %v171
    %v664 = vunpack.c.h.b16 %v171
    %v665 = vunpack.c.l.b16 %v172
    %v666 = vunpack.c.l.b16 %v173
    %v667 = vunpack.c.h.b16 %v173
    %v668 = vunpack.c.l.b16 %v174
    %v669 = vunpack.c.l.b16 %v175
    %v670 = vunpack.c.h.b16 %v175
    %v671 = vunpack.c.l.b16 %v176
    %v672 = vunpack.c.l.b16 %v177
    %v673 = vunpack.c.h.b16 %v177
    %v674 = vunpack.c.l.b16 %v178
    %v675 = vunpack.c.l.b16 %v179
    %v676 = vunpack.c.h.b16 %v179
    %v677 = vunpack.c.l.b16 %v180
    %v678 = vunpack.c.l.b16 %v181
    %v679 = vunpack.c.h.b16 %v181
    %v680 = vunpack.c.l.b16 %v182
    %v681 = vunpack.c.l.b16 %v183
    %v682 = vunpack.c.h.b16 %v183
    %v683 = vunpack.c.l.b16 %v184
    %v684 = vunpack.c.l.b16 %v185
    %v685 = vunpack.c.h.b16 %v185
    %v686 = vunpack.c.l.b16 %v186
    %v687 = vunpack.c.l.b16 %v187
    %v688 = vunpack.c.h.b16 %v187
    %v689 = vunpack.c.l.b16 %v188
    %v690 = vunpack.c.l.b16 %v189
    %v691 = vunpack.c.h.b16 %v189
    %v692 = vunpack.c.l.b16 %v190
    %v693 = vunpack.c.l.b16 %v191
    %v694 = vunpack.c.h.b16 %v191
    %v695 = vunpack.c.l.b16 %v192
    %v696 = vunpack.c.l.b16 %v193
    %v697 = vunpack.c.h.b16 %v193
    %v698 = vunpack.c.l.b16 %v194
    %v699 = vunpack.c.l.b16 %v195
    %v700 = vunpack.c.h.b16 %v195
    %v701 = vunpack.c.l.b16 %v196
    %v702 = vunpack.c.l.b16 %v197
    %v703 = vunpack.c.h.b16 %v197
    %v704 = vunpack.c.l.b16 %v198
    %v705 = vunpack.c.l.b16 %v199
    %v706 = vunpack.c.h.b16 %v199
    %v707 = vunpack.c.l.b16 %v200
    %v708 = vunpack.c.l.b16 %v201
    %v709 = vunpack.c.h.b16 %v201
    %v710 = vunpack.c.l.b16 %v202
    %v711 = vunpack.c.l.b16 %v203
    %v712 = vunpack.c.h.b16 %v203
    %v713 = vunpack.c.l.b16 %v204
    %v714 = vunpack.c.l.b16 %v205
    %v715 = vunpack.c.h.b16 %v205
    %v716 = vunpack.c.l.b16 %v206
    %v717 = vunpack.c.l.b16 %v207
    %v718 = vunpack.c.h.b16 %v207
    %v719 = vunpack.c.l.b16 %v208
    %v720 = vunpack.c.l.b16 %v209
    %v721 = vunpack.c.h.b16 %v209
    %v722 = vunpack.c.l.b16 %v210
    %v723 = vunpack.c.l.b16 %v211
    %v724 = vunpack.c.h.b16 %v211
    %v725 = vunpack.c.l.b16 %v212
    %v726 = vunpack.c.l.b16 %v213
    %v727 = vunpack.c.h.b16 %v213
    %v728 = vunpack.c.l.b16 %v214
    %v729 = vunpack.c.l.b16 %v215
    %v730 = vunpack.c.h.b16 %v215
    %v731 = vunpack.c.l.b16 %v216
    %v732 = vunpack.c.l.b16 %v217
    %v733 = vunpack.c.h.b16 %v217
    %v734 = vunpack.c.l.b16 %v218
    %v735 = vunpack.c.l.b16 %v219
    %v736 = vunpack.c.h.b16 %v219
    %v737 = vunpack.c.l.b16 %v220
    %v738 = vunpack.c.l.b16 %v221
    %v739 = vunpack.c.h.b16 %v221
    %v740 = vunpack.c.l.b16 %v222
    %v741 = vpack.c.b16 %v456, %v453
    %v742 = vpack.c.b16 %v457, %v454
    %v743 = vpack.c.b16 %v458, %v455
    %v744 = vpack.c.b16 %v462, %v459
    %v745 = vpack.c.b16 %v463, %v460
    %v746 = vpack.c.b16 %v464, %v461
    %v747 = vpack.c.b16 %v468, %v465
    %v748 = vpack.c.b16 %v469, %v466
    %v749 = vpack.c.b16 %v470, %v467
    %v750 = vpack.c.b16 %v474, %v471
    %v751 = vpack.c.b16 %v475, %v472
    %v752 = vpack.c.b16 %v476, %v473
    %v753 = vpack.c.b16 %v480, %v477
    %v754 = vpack.c.b16 %v481, %v478
    %v755 = vpack.c.b16 %v482, %v479
    %v756 = vpack.c.b16 %v486, %v483
    %v757 = vpack.c.b16 %v487, %v484
    %v758 = vpack.c.b16 %v488, %v485
    %v759 = vpack.c.b16 %v492, %v489
    %v760 = vpack.c.b16 %v493, %v490
    %v761 = vpack.c.b16 %v494, %v491
    %v762 = vpack.c.b16 %v498, %v495
    %v763 = vpack.c.b16 %v499, %v496
    %v764 = vpack.c.b16 %v500, %v497
    %v765 = vpack.c.b16 %v504, %v501
    %v766 = vpack.c.b16 %v505, %v502
    %v767 = vpack.c.b16 %v506, %v503
    %v768 = vpack.c.b16 %v510, %v507
    %v769 = vpack.c.b16 %v511, %v508
    %v770 = vpack.c.b16 %v512, %v509
    %v771 = vpack.c.b16 %v516, %v513
    %v772 = vpack.c.b16 %v517, %v514
    %v773 = vpack.c.b16 %v518, %v515
    %v774 = vpack.c.b16 %v522, %v519
    %v775 = vpack.c.b16 %v523, %v520
    %v776 = vpack.c.b16 %v524, %v521
    %v777 = vpack.c.b16 %v528, %v525
    %v778 = vpack.c.b16 %v529, %v526
    %v779 = vpack.c.b16 %v530, %v527
    %v780 = vpack.c.b16 %v534, %v531
    %v781 = vpack.c.b16 %v535, %v532
    %v782 = vpack.c.b16 %v536, %v533
    %v783 = vpack.c.b16 %v540, %v537
    %v784 = vpack.c.b16 %v541, %v538
    %v785 = vpack.c.b16 %v542, %v539
    %v786 = vpack.c.b16 %v546, %v543
    %v787 = vpack.c.b16 %v547, %v544
    %v788 = vpack.c.b16 %v548, %v545
    %v789 = vpack.c.b16 %v552, %v549
    %v790 = vpack.c.b16 %v553, %v550
    %v791 = vpack.c.b16 %v554, %v551
    %v792 = vpack.c.b16 %v558, %v555
    %v793 = vpack.c.b16 %v559, %v556
    %v794 = vpack.c.b16 %v560, %v557
    %v795 = vpack.c.b16 %v564, %v561
    %v796 = vpack.c.b16 %v565, %v562
    %v797 = vpack.c.b16 %v566, %v563
    %v798 = vpack.c.b16 %v570, %v567
    %v799 = vpack.c.b16 %v571, %v568
    %v800 = vpack.c.b16 %v572, %v569
    %v801 = vpack.c.b16 %v576, %v573
    %v802 = vpack.c.b16 %v577, %v574
    %v803 = vpack.c.b16 %v578, %v575
    %v804 = vpack.c.b16 %v582, %v579
    %v805 = vpack.c.b16 %v583, %v580
    %v806 = vpack.c.b16 %v584, %v581
    %v807 = vpack.c.b16 %v588, %v585
    %v808 = vpack.c.b16 %v589, %v586
    %v809 = vpack.c.b16 %v590, %v587
    %v810 = vpack.c.b16 %v594, %v591
    %v811 = vpack.c.b16 %v595, %v592
    %v812 = vpack.c.b16 %v596, %v593
    %v813 = vpack.c.b16 %v600, %v597
    %v814 = vpack.c.b16 %v601, %v598
    %v815 = vpack.c.b16 %v602, %v599
    %v816 = vpack.c.b16 %v606, %v603
    %v817 = vpack.c.b16 %v607, %v604
    %v818 = vpack.c.b16 %v608, %v605
    %v819 = vpack.c.b16 %v612, %v609
    %v820 = vpack.c.b16 %v613, %v610
    %v821 = vpack.c.b16 %v614, %v611
    %v822 = vpack.c.b16 %v618, %v615
    %v823 = vpack.c.b16 %v619, %v616
    %v824 = vpack.c.b16 %v620, %v617
    %v825 = vpack.c.b16 %v624, %v621
    %v826 = vpack.c.b16 %v625, %v622
    %v827 = vpack.c.b16 %v626, %v623
    %v828 = vpack.c.b16 %v630, %v627
    %v829 = vpack.c.b16 %v631, %v628
    %v830 = vpack.c.b16 %v632, %v629
    %v831 = vpack.c.b16 %v636, %v633
    %v832 = vpack.c.b16 %v637, %v634
    %v833 = vpack.c.b16 %v638, %v635
    %v834 = vpack.c.b16 %v642, %v639
    %v835 = vpack.c.b16 %v643, %v640
    %v836 = vpack.c.b16 %v644, %v641
    %v837 = vpack.c.b16 %v648, %v645
    %v838 = vpack.c.b16 %v649, %v646
    %v839 = vpack.c.b16 %v650, %v647
    %v840 = vpack.c.b16 %v654, %v651
    %v841 = vpack.c.b16 %v655, %v652
    %v842 = vpack.c.b16 %v656, %v653
    %v843 = vpack.c.b16 %v660, %v657
    %v844 = vpack.c.b16 %v661, %v658
    %v845 = vpack.c.b16 %v662, %v659
    %v846 = vpack.c.b16 %v666, %v663
    %v847 = vpack.c.b16 %v667, %v664
    %v848 = vpack.c.b16 %v668, %v665
    %v849 = vpack.c.b16 %v672, %v669
    %v850 = vpack.c.b16 %v673, %v670
    %v851 = vpack.c.b16 %v674, %v671
    %v852 = vpack.c.b16 %v678, %v675
    %v853 = vpack.c.b16 %v679, %v676
    %v854 = vpack.c.b16 %v680, %v677
    %v855 = vpack.c.b16 %v684, %v681
    %v856 = vpack.c.b16 %v685, %v682
    %v857 = vpack.c.b16 %v686, %v683
    %v858 = vpack.c.b16 %v690, %v687
    %v859 = vpack.c.b16 %v691, %v688
    %v860 = vpack.c.b16 %v692, %v689
    %v861 = vpack.c.b16 %v696, %v693
    %v862 = vpack.c.b16 %v697, %v694
    %v863 = vpack.c.b16 %v698, %v695
    %v864 = vpack.c.b16 %v702, %v699
    %v865 = vpack.c.b16 %v703, %v700
    %v866 = vpack.c.b16 %v704, %v701
    %v867 = vpack.c.b16 %v708, %v705
    %v868 = vpack.c.b16 %v709, %v706
    %v869 = vpack.c.b16 %v710, %v707
    %v870 = vpack.c.b16 %v714, %v711
    %v871 = vpack.c.b16 %v715, %v712
    %v872 = vpack.c.b16 %v716, %v713
    %v873 = vpack.c.b16 %v720, %v717
    %v874 = vpack.c.b16 %v721, %v718
    %v875 = vpack.c.b16 %v722, %v719
    %v876 = vpack.c.b16 %v726, %v723
    %v877 = vpack.c.b16 %v727, %v724
    %v878 = vpack.c.b16 %v728, %v725
    %v879 = vpack.c.b16 %v732, %v729
    %v880 = vpack.c.b16 %v733, %v730
    %v881 = vpack.c.b16 %v734, %v731
    %v882 = vpack.c.b16 %v738, %v735
    %v883 = vpack.c.b16 %v739, %v736
    %v884 = vpack.c.b16 %v740, %v737
    %1029 = vmatprep.subr.bf16.mxu0 %v742
    %1030 = vmatpush1.bf16.msra.mxu0 %v741
    %1031 = vmatprep.subr.bf16.mxu0 %v745
    %1032 = vmatpush1.bf16.msra.mxu0 %v744
    %1033 = vmatprep.subr.bf16.mxu0 %v748
    %1034 = vmatpush1.bf16.msra.mxu0 %v747
    %1035 = vmatprep.subr.bf16.mxu0 %v751
    %1036 = vmatpush1.bf16.msra.mxu0 %v750
    %1037 = vmatprep.subr.bf16.mxu0 %v754
    %1038 = vmatpush1.bf16.msra.mxu0 %v753
    %1039 = vmatprep.subr.bf16.mxu0 %v757
    %1040 = vmatpush1.bf16.msra.mxu0 %v756
    %1041 = vmatprep.subr.bf16.mxu0 %v760
    %1042 = vmatpush1.bf16.msra.mxu0 %v759
    %1043 = vmatprep.subr.bf16.mxu0 %v763
    %1044 = vmatpush1.bf16.msra.mxu0 %v762
    %1045 = vmatprep.subr.bf16.mxu0 %v766
    %1046 = vmatpush1.bf16.msra.mxu0 %v765
    %1047 = vmatprep.subr.bf16.mxu0 %v769
    %1048 = vmatpush1.bf16.msra.mxu0 %v768
    %1049 = vmatprep.subr.bf16.mxu0 %v772
    %1050 = vmatpush1.bf16.msra.mxu0 %v771
    %1051 = vmatprep.subr.bf16.mxu0 %v775
    %1052 = vmatpush1.bf16.msra.mxu0 %v774
    %1053 = vmatprep.subr.bf16.mxu0 %v778
    %1054 = vmatpush1.bf16.msra.mxu0 %v777
    %1055 = vmatprep.subr.bf16.mxu0 %v781
    %1056 = vmatpush1.bf16.msra.mxu0 %v780
    %1057 = vmatprep.subr.bf16.mxu0 %v784
    %1058 = vmatpush1.bf16.msra.mxu0 %v783
    %1059 = vmatprep.subr.bf16.mxu0 %v787
    %1060 = vmatpush1.bf16.msra.mxu0 %v786
    %1061 = vmatprep.mubr.bf16.mxu0 %v250
    %1062 = vmatmul.mubr.bf16.gmra.mrb[0].mxu0 %v249
    %v1063 = vpop.f32.mrb[0].mxu0
    %v1064 = vadd.f32 %v228, %v1063
    %v1065 = vpop.f32.mrb[0].mxu0
    %v1066 = vadd.f32 %v232, %v1065
    %v1067 = vpop.f32.mrb[0].mxu0
    %v1068 = vpop.f32.mrb[0].mxu0
    %1069 = vdwg.mxu0
    %1070 = vmatprep.subr.bf16.mxu0 %v790
    %1071 = vmatpush1.bf16.msra.mxu0 %v789
    %1072 = vmatprep.subr.bf16.mxu0 %v793
    %1073 = vmatpush1.bf16.msra.mxu0 %v792
    %1074 = vmatprep.subr.bf16.mxu0 %v796
    %1075 = vmatpush1.bf16.msra.mxu0 %v795
    %1076 = vmatprep.subr.bf16.mxu0 %v799
    %1077 = vmatpush1.bf16.msra.mxu0 %v798
    %1078 = vmatprep.subr.bf16.mxu0 %v802
    %1079 = vmatpush1.bf16.msra.mxu0 %v801
    %1080 = vmatprep.subr.bf16.mxu0 %v805
    %1081 = vmatpush1.bf16.msra.mxu0 %v804
    %1082 = vmatprep.subr.bf16.mxu0 %v808
    %1083 = vmatpush1.bf16.msra.mxu0 %v807
    %1084 = vmatprep.subr.bf16.mxu0 %v811
    %1085 = vmatpush1.bf16.msra.mxu0 %v810
    %1086 = vmatprep.subr.bf16.mxu0 %v814
    %1087 = vmatpush1.bf16.msra.mxu0 %v813
    %1088 = vmatprep.subr.bf16.mxu0 %v817
    %1089 = vmatpush1.bf16.msra.mxu0 %v816
    %1090 = vmatprep.subr.bf16.mxu0 %v820
    %1091 = vmatpush1.bf16.msra.mxu0 %v819
    %1092 = vmatprep.subr.bf16.mxu0 %v823
    %1093 = vmatpush1.bf16.msra.mxu0 %v822
    %1094 = vmatprep.subr.bf16.mxu0 %v826
    %1095 = vmatpush1.bf16.msra.mxu0 %v825
    %1096 = vmatprep.subr.bf16.mxu0 %v829
    %1097 = vmatpush1.bf16.msra.mxu0 %v828
    %1098 = vmatprep.subr.bf16.mxu0 %v832
    %1099 = vmatpush1.bf16.msra.mxu0 %v831
    %1100 = vmatprep.subr.bf16.mxu0 %v835
    %1101 = vmatpush1.bf16.msra.mxu0 %v834
    %1102 = vmatprep.mubr.bf16.mxu0 %v252
    %1103 = vmatmul.mubr.bf16.gmra.mrb[0].mxu0 %v251
    %v1104 = vpop.f32.mrb[0].mxu0
    %v1105 = vadd.f32 %v1064, %v1104
    %v1106 = vpop.f32.mrb[0].mxu0
    %v1107 = vadd.f32 %v1066, %v1106
    %v1108 = vpop.f32.mrb[0].mxu0
    %v1109 = vpop.f32.mrb[0].mxu0
    %1110 = vdwg.mxu0
    %1111 = vmatprep.subr.bf16.mxu0 %v838
    %1112 = vmatpush1.bf16.msra.mxu0 %v837
    %1113 = vmatprep.subr.bf16.mxu0 %v841
    %1114 = vmatpush1.bf16.msra.mxu0 %v840
    %1115 = vmatprep.subr.bf16.mxu0 %v844
    %1116 = vmatpush1.bf16.msra.mxu0 %v843
    %1117 = vmatprep.subr.bf16.mxu0 %v847
    %1118 = vmatpush1.bf16.msra.mxu0 %v846
    %1119 = vmatprep.subr.bf16.mxu0 %v850
    %1120 = vmatpush1.bf16.msra.mxu0 %v849
    %1121 = vmatprep.subr.bf16.mxu0 %v853
    %1122 = vmatpush1.bf16.msra.mxu0 %v852
    %1123 = vmatprep.subr.bf16.mxu0 %v856
    %1124 = vmatpush1.bf16.msra.mxu0 %v855
    %1125 = vmatprep.subr.bf16.mxu0 %v859
    %1126 = vmatpush1.bf16.msra.mxu0 %v858
    %1127 = vmatprep.subr.bf16.mxu0 %v862
    %1128 = vmatpush1.bf16.msra.mxu0 %v861
    %1129 = vmatprep.subr.bf16.mxu0 %v865
    %1130 = vmatpush1.bf16.msra.mxu0 %v864
    %1131 = vmatprep.subr.bf16.mxu0 %v868
    %1132 = vmatpush1.bf16.msra.mxu0 %v867
    %1133 = vmatprep.subr.bf16.mxu0 %v871
    %1134 = vmatpush1.bf16.msra.mxu0 %v870
    %1135 = vmatprep.subr.bf16.mxu0 %v874
    %1136 = vmatpush1.bf16.msra.mxu0 %v873
    %1137 = vmatprep.subr.bf16.mxu0 %v877
    %1138 = vmatpush1.bf16.msra.mxu0 %v876
    %1139 = vmatprep.subr.bf16.mxu0 %v880
    %1140 = vmatpush1.bf16.msra.mxu0 %v879
    %1141 = vmatprep.subr.bf16.mxu0 %v883
    %1142 = vmatpush1.bf16.msra.mxu0 %v882
    %1143 = vmatprep.mubr.bf16.mxu0 %v254
    %1144 = vmatmul.mubr.bf16.gmra.mrb[0].mxu0 %v253
    %v1145 = vpop.f32.mrb[0].mxu0
    %v1146 = vadd.f32 %v1105, %v1145
    %v1147 = vpop.f32.mrb[0].mxu0
    %v1148 = vadd.f32 %v1107, %v1147
    %v1149 = vpop.f32.mrb[0].mxu0
    %v1150 = vpop.f32.mrb[0].mxu0
    %1151 = vdwg.mxu0
    %1152 = vmatprep.subr.bf16.mxu0 0
    %1153 = vmatpush1.bf16.msra.mxu0 %v743
    %1154 = vmatprep.subr.bf16.mxu0 0
    %1155 = vmatpush1.bf16.msra.mxu0 %v746
    %1156 = vmatprep.subr.bf16.mxu0 0
    %1157 = vmatpush1.bf16.msra.mxu0 %v749
    %1158 = vmatprep.subr.bf16.mxu0 0
    %1159 = vmatpush1.bf16.msra.mxu0 %v752
    %1160 = vmatprep.subr.bf16.mxu0 0
    %1161 = vmatpush1.bf16.msra.mxu0 %v755
    %1162 = vmatprep.subr.bf16.mxu0 0
    %1163 = vmatpush1.bf16.msra.mxu0 %v758
    %1164 = vmatprep.subr.bf16.mxu0 0
    %1165 = vmatpush1.bf16.msra.mxu0 %v761
    %1166 = vmatprep.subr.bf16.mxu0 0
    %1167 = vmatpush1.bf16.msra.mxu0 %v764
    %1168 = vmatprep.subr.bf16.mxu0 0
    %1169 = vmatpush1.bf16.msra.mxu0 %v767
    %1170 = vmatprep.subr.bf16.mxu0 0
    %1171 = vmatpush1.bf16.msra.mxu0 %v770
    %1172 = vmatprep.subr.bf16.mxu0 0
    %1173 = vmatpush1.bf16.msra.mxu0 %v773
    %1174 = vmatprep.subr.bf16.mxu0 0
    %1175 = vmatpush1.bf16.msra.mxu0 %v776
    %1176 = vmatprep.subr.bf16.mxu0 0
    %1177 = vmatpush1.bf16.msra.mxu0 %v779
    %1178 = vmatprep.subr.bf16.mxu0 0
    %1179 = vmatpush1.bf16.msra.mxu0 %v782
    %1180 = vmatprep.subr.bf16.mxu0 0
    %1181 = vmatpush1.bf16.msra.mxu0 %v785
    %1182 = vmatprep.subr.bf16.mxu0 0
    %1183 = vmatpush1.bf16.msra.mxu0 %v788
    %1184 = vmatprep.mubr.bf16.mxu0 %v250
    %1185 = vmatmul.mubr.bf16.gmra.mrb[0].mxu0 %v249
    %v1186 = vpop.f32.mrb[0].mxu0
    %v1187 = vadd.f32 %v236, %v1186
    %v1188 = vpop.f32.mrb[0].mxu0
    %v1189 = vpop.f32.mrb[0].mxu0
    %v1190 = vpop.f32.mrb[0].mxu0
    %1191 = vdwg.mxu0
    %1192 = vmatprep.subr.bf16.mxu0 0
    %1193 = vmatpush1.bf16.msra.mxu0 %v791
    %1194 = vmatprep.subr.bf16.mxu0 0
    %1195 = vmatpush1.bf16.msra.mxu0 %v794
    %1196 = vmatprep.subr.bf16.mxu0 0
    %1197 = vmatpush1.bf16.msra.mxu0 %v797
    %1198 = vmatprep.subr.bf16.mxu0 0
    %1199 = vmatpush1.bf16.msra.mxu0 %v800
    %1200 = vmatprep.subr.bf16.mxu0 0
    %1201 = vmatpush1.bf16.msra.mxu0 %v803
    %1202 = vmatprep.subr.bf16.mxu0 0
    %1203 = vmatpush1.bf16.msra.mxu0 %v806
    %1204 = vmatprep.subr.bf16.mxu0 0
    %1205 = vmatpush1.bf16.msra.mxu0 %v809
    %1206 = vmatprep.subr.bf16.mxu0 0
    %1207 = vmatpush1.bf16.msra.mxu0 %v812
    %1208 = vmatprep.subr.bf16.mxu0 0
    %1209 = vmatpush1.bf16.msra.mxu0 %v815
    %1210 = vmatprep.subr.bf16.mxu0 0
    %1211 = vmatpush1.bf16.msra.mxu0 %v818
    %1212 = vmatprep.subr.bf16.mxu0 0
    %1213 = vmatpush1.bf16.msra.mxu0 %v821
    %1214 = vmatprep.subr.bf16.mxu0 0
    %1215 = vmatpush1.bf16.msra.mxu0 %v824
    %1216 = vmatprep.subr.bf16.mxu0 0
    %1217 = vmatpush1.bf16.msra.mxu0 %v827
    %1218 = vmatprep.subr.bf16.mxu0 0
    %1219 = vmatpush1.bf16.msra.mxu0 %v830
    %1220 = vmatprep.subr.bf16.mxu0 0
    %1221 = vmatpush1.bf16.msra.mxu0 %v833
    %1222 = vmatprep.subr.bf16.mxu0 0
    %1223 = vmatpush1.bf16.msra.mxu0 %v836
    %1224 = vmatprep.mubr.bf16.mxu0 %v252
    %1225 = vmatmul.mubr.bf16.gmra.mrb[0].mxu0 %v251
    %v1226 = vpop.f32.mrb[0].mxu0
    %v1227 = vadd.f32 %v1187, %v1226
    %v1228 = vpop.f32.mrb[0].mxu0
    %v1229 = vpop.f32.mrb[0].mxu0
    %v1230 = vpop.f32.mrb[0].mxu0
    %1231 = vdwg.mxu0
    %1232 = vmatprep.subr.bf16.mxu0 0
    %1233 = vmatpush1.bf16.msra.mxu0 %v839
    %1234 = vmatprep.subr.bf16.mxu0 0
    %1235 = vmatpush1.bf16.msra.mxu0 %v842
    %1236 = vmatprep.subr.bf16.mxu0 0
    %1237 = vmatpush1.bf16.msra.mxu0 %v845
    %1238 = vmatprep.subr.bf16.mxu0 0
    %1239 = vmatpush1.bf16.msra.mxu0 %v848
    %1240 = vmatprep.subr.bf16.mxu0 0
    %1241 = vmatpush1.bf16.msra.mxu0 %v851
    %1242 = vmatprep.subr.bf16.mxu0 0
    %1243 = vmatpush1.bf16.msra.mxu0 %v854
    %1244 = vmatprep.subr.bf16.mxu0 0
    %1245 = vmatpush1.bf16.msra.mxu0 %v857
    %1246 = vmatprep.subr.bf16.mxu0 0
    %1247 = vmatpush1.bf16.msra.mxu0 %v860
    %1248 = vmatprep.subr.bf16.mxu0 0
    %1249 = vmatpush1.bf16.msra.mxu0 %v863
    %1250 = vmatprep.subr.bf16.mxu0 0
    %1251 = vmatpush1.bf16.msra.mxu0 %v866
    %1252 = vmatprep.subr.bf16.mxu0 0
    %1253 = vmatpush1.bf16.msra.mxu0 %v869
    %1254 = vmatprep.subr.bf16.mxu0 0
    %1255 = vmatpush1.bf16.msra.mxu0 %v872
    %1256 = vmatprep.subr.bf16.mxu0 0
    %1257 = vmatpush1.bf16.msra.mxu0 %v875
    %1258 = vmatprep.subr.bf16.mxu0 0
    %1259 = vmatpush1.bf16.msra.mxu0 %v878
    %1260 = vmatprep.subr.bf16.mxu0 0
    %1261 = vmatpush1.bf16.msra.mxu0 %v881
    %1262 = vmatprep.subr.bf16.mxu0 0
    %1263 = vmatpush1.bf16.msra.mxu0 %v884
    %1264 = vmatprep.mubr.bf16.mxu0 %v254
    %1265 = vmatmul.mubr.bf16.gmra.mrb[0].mxu0 %v253
    %v1266 = vpop.f32.mrb[0].mxu0
    %v1267 = vadd.f32 %v1227, %v1266
    %v1268 = vpop.f32.mrb[0].mxu0
    %v1269 = vpop.f32.mrb[0].mxu0
    %v1270 = vpop.f32.mrb[0].mxu0
    %1271 = vdwg.mxu0
    %v1272 = vmax.f32 %v1146, 0.0
    %v1273 = vmax.f32 %v1148, 0.0
    %v1274 = vmax.f32 %v1267, 0.0
    %v1275 = vpack.c.bf16 %v1272, %v1272
    %v1276 = vpack.c.bf16 %v1273, %v1273
    %v1277 = vpack.c.bf16 %v1274, %v1274
    %v1278 = vld [vmem:[%s3] sm:$0xff]
    %v1279 = vld [vmem:[%s3 + $0x8] sm:$0xff]
    %v1280 = vld [vmem:[%s3 + $0x10] sm:$0xff]
    %v1281 = vld [vmem:[%s3 + $0x18] sm:$0xff]
    %v1282 = vld [vmem:[%s3 + $0x20] sm:$0xff]
    %v1283 = vld [vmem:[%s3 + $0x28] sm:$0xff]
    %v1284 = vld [vmem:[%s3 + $0x30] sm:$0xff]
    %v1285 = vld [vmem:[%s3 + $0x38] sm:$0xff]
    %v1286 = vld [vmem:[%s3 + $0x40] sm:$0xff]
    %v1287 = vld [vmem:[%s3 + $0x48] sm:$0xff]
    %v1288 = vld [vmem:[%s3 + $0x50] sm:$0xff]
    %v1289 = vld [vmem:[%s3 + $0x58] sm:$0xff]
    %v1290 = vld [vmem:[%s3 + $0x60] sm:$0xff]
    %v1291 = vld [vmem:[%s3 + $0x68] sm:$0xff]
    %v1292 = vld [vmem:[%s3 + $0x70] sm:$0xff]
    %v1293 = vld [vmem:[%s3 + $0x78] sm:$0xff]
    %v1294 = vld [vmem:[%s3 + $0x80] sm:$0xff]
    %v1295 = vld [vmem:[%s3 + $0x88] sm:$0xff]
    %v1296 = vld [vmem:[%s3 + $0x90] sm:$0xff]
    %v1297 = vld [vmem:[%s3 + $0x98] sm:$0xff]
    %v1298 = vld [vmem:[%s3 + $0xa0] sm:$0xff]
    %v1299 = vld [vmem:[%s3 + $0xa8] sm:$0xff]
    %v1300 = vld [vmem:[%s3 + $0xb0] sm:$0xff]
    %v1301 = vld [vmem:[%s3 + $0xb8] sm:$0xff]
    %v1302 = vld [vmem:[%s3 + $0xc0] sm:$0xff]
    %v1303 = vld [vmem:[%s3 + $0xc8] sm:$0xff]
    %v1304 = vld [vmem:[%s3 + $0xd0] sm:$0xff]
    %v1305 = vld [vmem:[%s3 + $0xd8] sm:$0xff]
    %v1306 = vld [vmem:[%s3 + $0xe0] sm:$0xff]
    %v1307 = vld [vmem:[%s3 + $0xe8] sm:$0xff]
    %v1308 = vld [vmem:[%s3 + $0xf0] sm:$0xff]
    %v1309 = vld [vmem:[%s3 + $0xf8] sm:$0xff]
    %v1310 = vld [vmem:[%s3 + $0x100] sm:$0xff]
    %v1311 = vld [vmem:[%s3 + $0x108] sm:$0xff]
    %v1312 = vld [vmem:[%s3 + $0x110] sm:$0xff]
    %v1313 = vld [vmem:[%s3 + $0x118] sm:$0xff]
    %v1314 = vld [vmem:[%s3 + $0x120] sm:$0xff]
    %v1315 = vld [vmem:[%s3 + $0x128] sm:$0xff]
    %v1316 = vld [vmem:[%s3 + $0x130] sm:$0xff]
    %v1317 = vld [vmem:[%s3 + $0x138] sm:$0xff]
    %v1318 = vld [vmem:[%s3 + $0x140] sm:$0xff]
    %v1319 = vld [vmem:[%s3 + $0x148] sm:$0xff]
    %v1320 = vld [vmem:[%s3 + $0x150] sm:$0xff]
    %v1321 = vld [vmem:[%s3 + $0x158] sm:$0xff]
    %v1322 = vld [vmem:[%s3 + $0x160] sm:$0xff]
    %v1323 = vld [vmem:[%s3 + $0x168] sm:$0xff]
    %v1324 = vld [vmem:[%s3 + $0x170] sm:$0xff]
    %v1325 = vld [vmem:[%s3 + $0x178] sm:$0xff]
    %v1326 = vld [vmem:[%s4] sm:$0x3]
    %v1328 = vlaneseq
    %v1329 = vshrl.u32 %v1328, 7
    %v1330 = vsub.s32 0, %v1329
    %v1331 = vrot.slane %v1326, %v1330
    %v1332 = vlaneseq
    %v1333 = vshrl.u32 %v1332, 7
    %v1334 = vsub.s32 1, %v1333
    %v1335 = vrot.slane %v1326, %v1334
    %v1386 = vunpack.c.l.b16 %v1278
    %v1387 = vunpack.c.h.b16 %v1278
    %v1388 = vunpack.c.l.b16 %v1279
    %v1389 = vunpack.c.h.b16 %v1279
    %v1390 = vunpack.c.l.b16 %v1280
    %v1391 = vunpack.c.h.b16 %v1280
    %v1392 = vunpack.c.l.b16 %v1281
    %v1393 = vunpack.c.h.b16 %v1281
    %v1394 = vunpack.c.l.b16 %v1282
    %v1395 = vunpack.c.h.b16 %v1282
    %v1396 = vunpack.c.l.b16 %v1283
    %v1397 = vunpack.c.h.b16 %v1283
    %v1398 = vunpack.c.l.b16 %v1284
    %v1399 = vunpack.c.h.b16 %v1284
    %v1400 = vunpack.c.l.b16 %v1285
    %v1401 = vunpack.c.h.b16 %v1285
    %v1402 = vunpack.c.l.b16 %v1286
    %v1403 = vunpack.c.h.b16 %v1286
    %v1404 = vunpack.c.l.b16 %v1287
    %v1405 = vunpack.c.h.b16 %v1287
    %v1406 = vunpack.c.l.b16 %v1288
    %v1407 = vunpack.c.h.b16 %v1288
    %v1408 = vunpack.c.l.b16 %v1289
    %v1409 = vunpack.c.h.b16 %v1289
    %v1410 = vunpack.c.l.b16 %v1290
    %v1411 = vunpack.c.h.b16 %v1290
    %v1412 = vunpack.c.l.b16 %v1291
    %v1413 = vunpack.c.h.b16 %v1291
    %v1414 = vunpack.c.l.b16 %v1292
    %v1415 = vunpack.c.h.b16 %v1292
    %v1416 = vunpack.c.l.b16 %v1293
    %v1417 = vunpack.c.h.b16 %v1293
    %v1418 = vunpack.c.l.b16 %v1294
    %v1419 = vunpack.c.h.b16 %v1294
    %v1420 = vunpack.c.l.b16 %v1295
    %v1421 = vunpack.c.h.b16 %v1295
    %v1422 = vunpack.c.l.b16 %v1296
    %v1423 = vunpack.c.h.b16 %v1296
    %v1424 = vunpack.c.l.b16 %v1297
    %v1425 = vunpack.c.h.b16 %v1297
    %v1426 = vunpack.c.l.b16 %v1298
    %v1427 = vunpack.c.h.b16 %v1298
    %v1428 = vunpack.c.l.b16 %v1299
    %v1429 = vunpack.c.h.b16 %v1299
    %v1430 = vunpack.c.l.b16 %v1300
    %v1431 = vunpack.c.h.b16 %v1300
    %v1432 = vunpack.c.l.b16 %v1301
    %v1433 = vunpack.c.h.b16 %v1301
    %v1434 = vunpack.c.l.b16 %v1302
    %v1435 = vunpack.c.h.b16 %v1302
    %v1436 = vunpack.c.l.b16 %v1303
    %v1437 = vunpack.c.h.b16 %v1303
    %v1438 = vunpack.c.l.b16 %v1304
    %v1439 = vunpack.c.h.b16 %v1304
    %v1440 = vunpack.c.l.b16 %v1305
    %v1441 = vunpack.c.h.b16 %v1305
    %v1442 = vunpack.c.l.b16 %v1306
    %v1443 = vunpack.c.h.b16 %v1306
    %v1444 = vunpack.c.l.b16 %v1307
    %v1445 = vunpack.c.h.b16 %v1307
    %v1446 = vunpack.c.l.b16 %v1308
    %v1447 = vunpack.c.h.b16 %v1308
    %v1448 = vunpack.c.l.b16 %v1309
    %v1449 = vunpack.c.h.b16 %v1309
    %v1450 = vunpack.c.l.b16 %v1310
    %v1451 = vunpack.c.h.b16 %v1310
    %v1452 = vunpack.c.l.b16 %v1311
    %v1453 = vunpack.c.h.b16 %v1311
    %v1454 = vunpack.c.l.b16 %v1312
    %v1455 = vunpack.c.h.b16 %v1312
    %v1456 = vunpack.c.l.b16 %v1313
    %v1457 = vunpack.c.h.b16 %v1313
    %v1458 = vunpack.c.l.b16 %v1314
    %v1459 = vunpack.c.h.b16 %v1314
    %v1460 = vunpack.c.l.b16 %v1315
    %v1461 = vunpack.c.h.b16 %v1315
    %v1462 = vunpack.c.l.b16 %v1316
    %v1463 = vunpack.c.h.b16 %v1316
    %v1464 = vunpack.c.l.b16 %v1317
    %v1465 = vunpack.c.h.b16 %v1317
    %v1466 = vunpack.c.l.b16 %v1318
    %v1467 = vunpack.c.h.b16 %v1318
    %v1468 = vunpack.c.l.b16 %v1319
    %v1469 = vunpack.c.h.b16 %v1319
    %v1470 = vunpack.c.l.b16 %v1320
    %v1471 = vunpack.c.h.b16 %v1320
    %v1472 = vunpack.c.l.b16 %v1321
    %v1473 = vunpack.c.h.b16 %v1321
    %v1474 = vunpack.c.l.b16 %v1322
    %v1475 = vunpack.c.h.b16 %v1322
    %v1476 = vunpack.c.l.b16 %v1323
    %v1477 = vunpack.c.h.b16 %v1323
    %v1478 = vunpack.c.l.b16 %v1324
    %v1479 = vunpack.c.h.b16 %v1324
    %v1480 = vunpack.c.l.b16 %v1325
    %v1481 = vunpack.c.h.b16 %v1325
    %v1482 = vpack.c.b16 %v1388, %v1386
    %v1483 = vpack.c.b16 %v1389, %v1387
    %v1484 = vpack.c.b16 %v1392, %v1390
    %v1485 = vpack.c.b16 %v1393, %v1391
    %v1486 = vpack.c.b16 %v1396, %v1394
    %v1487 = vpack.c.b16 %v1397, %v1395
    %v1488 = vpack.c.b16 %v1400, %v1398
    %v1489 = vpack.c.b16 %v1401, %v1399
    %v1490 = vpack.c.b16 %v1404, %v1402
    %v1491 = vpack.c.b16 %v1405, %v1403
    %v1492 = vpack.c.b16 %v1408, %v1406
    %v1493 = vpack.c.b16 %v1409, %v1407
    %v1494 = vpack.c.b16 %v1412, %v1410
    %v1495 = vpack.c.b16 %v1413, %v1411
    %v1496 = vpack.c.b16 %v1416, %v1414
    %v1497 = vpack.c.b16 %v1417, %v1415
    %v1498 = vpack.c.b16 %v1420, %v1418
    %v1499 = vpack.c.b16 %v1421, %v1419
    %v1500 = vpack.c.b16 %v1424, %v1422
    %v1501 = vpack.c.b16 %v1425, %v1423
    %v1502 = vpack.c.b16 %v1428, %v1426
    %v1503 = vpack.c.b16 %v1429, %v1427
    %v1504 = vpack.c.b16 %v1432, %v1430
    %v1505 = vpack.c.b16 %v1433, %v1431
    %v1506 = vpack.c.b16 %v1436, %v1434
    %v1507 = vpack.c.b16 %v1437, %v1435
    %v1508 = vpack.c.b16 %v1440, %v1438
    %v1509 = vpack.c.b16 %v1441, %v1439
    %v1510 = vpack.c.b16 %v1444, %v1442
    %v1511 = vpack.c.b16 %v1445, %v1443
    %v1512 = vpack.c.b16 %v1448, %v1446
    %v1513 = vpack.c.b16 %v1449, %v1447
    %v1514 = vpack.c.b16 %v1452, %v1450
    %v1515 = vpack.c.b16 %v1453, %v1451
    %v1516 = vpack.c.b16 %v1456, %v1454
    %v1517 = vpack.c.b16 %v1457, %v1455
    %v1518 = vpack.c.b16 %v1460, %v1458
    %v1519 = vpack.c.b16 %v1461, %v1459
    %v1520 = vpack.c.b16 %v1464, %v1462
    %v1521 = vpack.c.b16 %v1465, %v1463
    %v1522 = vpack.c.b16 %v1468, %v1466
    %v1523 = vpack.c.b16 %v1469, %v1467
    %v1524 = vpack.c.b16 %v1472, %v1470
    %v1525 = vpack.c.b16 %v1473, %v1471
    %v1526 = vpack.c.b16 %v1476, %v1474
    %v1527 = vpack.c.b16 %v1477, %v1475
    %v1528 = vpack.c.b16 %v1480, %v1478
    %v1529 = vpack.c.b16 %v1481, %v1479
    %1578 = vmatprep.subr.bf16.mxu0 %v1483
    %1579 = vmatpush1.bf16.msra.mxu0 %v1482
    %1580 = vmatprep.subr.bf16.mxu0 %v1485
    %1581 = vmatpush1.bf16.msra.mxu0 %v1484
    %1582 = vmatprep.subr.bf16.mxu0 %v1487
    %1583 = vmatpush1.bf16.msra.mxu0 %v1486
    %1584 = vmatprep.subr.bf16.mxu0 %v1489
    %1585 = vmatpush1.bf16.msra.mxu0 %v1488
    %1586 = vmatprep.subr.bf16.mxu0 %v1491
    %1587 = vmatpush1.bf16.msra.mxu0 %v1490
    %1588 = vmatprep.subr.bf16.mxu0 %v1493
    %1589 = vmatpush1.bf16.msra.mxu0 %v1492
    %1590 = vmatprep.subr.bf16.mxu0 %v1495
    %1591 = vmatpush1.bf16.msra.mxu0 %v1494
    %1592 = vmatprep.subr.bf16.mxu0 %v1497
    %1593 = vmatpush1.bf16.msra.mxu0 %v1496
    %1594 = vmatprep.subr.bf16.mxu0 %v1499
    %1595 = vmatpush1.bf16.msra.mxu0 %v1498
    %1596 = vmatprep.subr.bf16.mxu0 %v1501
    %1597 = vmatpush1.bf16.msra.mxu0 %v1500
    %1598 = vmatprep.subr.bf16.mxu0 %v1503
    %1599 = vmatpush1.bf16.msra.mxu0 %v1502
    %1600 = vmatprep.subr.bf16.mxu0 %v1505
    %1601 = vmatpush1.bf16.msra.mxu0 %v1504
    %1602 = vmatprep.subr.bf16.mxu0 %v1507
    %1603 = vmatpush1.bf16.msra.mxu0 %v1506
    %1604 = vmatprep.subr.bf16.mxu0 %v1509
    %1605 = vmatpush1.bf16.msra.mxu0 %v1508
    %1606 = vmatprep.subr.bf16.mxu0 %v1511
    %1607 = vmatpush1.bf16.msra.mxu0 %v1510
    %1608 = vmatprep.subr.bf16.mxu0 %v1513
    %1609 = vmatpush1.bf16.msra.mxu0 %v1512
    %1610 = vmatprep.mubr.bf16.mxu0 %v1276
    %1611 = vmatmul.mubr.bf16.gmra.mrb[0].mxu0 %v1275
    %v1612 = vpop.f32.mrb[0].mxu0
    %v1613 = vadd.f32 %v1331, %v1612
    %v1614 = vpop.f32.mrb[0].mxu0
    %v1615 = vadd.f32 %v1335, %v1614
    %v1616 = vpop.f32.mrb[0].mxu0
    %v1617 = vpop.f32.mrb[0].mxu0
    %1618 = vdwg.mxu0
    %1619 = vmatprep.subr.bf16.mxu0 %v1515
    %1620 = vmatpush1.bf16.msra.mxu0 %v1514
    %1621 = vmatprep.subr.bf16.mxu0 %v1517
    %1622 = vmatpush1.bf16.msra.mxu0 %v1516
    %1623 = vmatprep.subr.bf16.mxu0 %v1519
    %1624 = vmatpush1.bf16.msra.mxu0 %v1518
    %1625 = vmatprep.subr.bf16.mxu0 %v1521
    %1626 = vmatpush1.bf16.msra.mxu0 %v1520
    %1627 = vmatprep.subr.bf16.mxu0 %v1523
    %1628 = vmatpush1.bf16.msra.mxu0 %v1522
    %1629 = vmatprep.subr.bf16.mxu0 %v1525
    %1630 = vmatpush1.bf16.msra.mxu0 %v1524
    %1631 = vmatprep.subr.bf16.mxu0 %v1527
    %1632 = vmatpush1.bf16.msra.mxu0 %v1526
    %1633 = vmatprep.subr.bf16.mxu0 %v1529
    %1634 = vmatpush1.bf16.msra.mxu0 %v1528
    %1635 = vmatprep.subr.bf16.mxu0 0
    %1636 = vmatpush1.bf16.msra.mxu0 0
    %1637 = vmatprep.subr.bf16.mxu0 0
    %1638 = vmatpush1.bf16.msra.mxu0 0
    %1639 = vmatprep.subr.bf16.mxu0 0
    %1640 = vmatpush1.bf16.msra.mxu0 0
    %1641 = vmatprep.subr.bf16.mxu0 0
    %1642 = vmatpush1.bf16.msra.mxu0 0
    %1643 = vmatprep.subr.bf16.mxu0 0
    %1644 = vmatpush1.bf16.msra.mxu0 0
    %1645 = vmatprep.subr.bf16.mxu0 0
    %1646 = vmatpush1.bf16.msra.mxu0 0
    %1647 = vmatprep.subr.bf16.mxu0 0
    %1648 = vmatpush1.bf16.msra.mxu0 0
    %1649 = vmatprep.subr.bf16.mxu0 0
    %1650 = vmatpush1.bf16.msra.mxu0 0
    %1651 = vmatprep.mubr.bf16.mxu0 0
    %1652 = vmatmul.mubr.bf16.gmra.mrb[0].mxu0 %v1277
    %v1653 = vpop.f32.mrb[0].mxu0
    %v1654 = vadd.f32 %v1613, %v1653
    %v1655 = vpop.f32.mrb[0].mxu0
    %v1656 = vadd.f32 %v1615, %v1655
    %v1657 = vpop.f32.mrb[0].mxu0
    %v1658 = vpop.f32.mrb[0].mxu0
    %1659 = vdwg.mxu0
    %v1660 = vmax.f32 %v1654, 0.0
    %v1661 = vmax.f32 %v1656, 0.0
    %v1662 = vpack.c.bf16 %v1660, %v1660
    %v1663 = vpack.c.bf16 %v1661, %v1661
    %v1664 = vld [vmem:[%s5] sm:$0xf]
    %v1665 = vld [vmem:[%s5 + $0x4] sm:$0xf]
    %v1666 = vld [vmem:[%s5 + $0x8] sm:$0xf]
    %v1667 = vld [vmem:[%s5 + $0xc] sm:$0xf]
    %v1668 = vld [vmem:[%s5 + $0x10] sm:$0xf]
    %v1669 = vld [vmem:[%s5 + $0x14] sm:$0xf]
    %v1670 = vld [vmem:[%s5 + $0x18] sm:$0xf]
    %v1671 = vld [vmem:[%s5 + $0x1c] sm:$0xf]
    %v1672 = vld [vmem:[%s5 + $0x20] sm:$0xf]
    %v1673 = vld [vmem:[%s5 + $0x24] sm:$0xf]
    %v1674 = vld [vmem:[%s5 + $0x28] sm:$0xf]
    %v1675 = vld [vmem:[%s5 + $0x2c] sm:$0xf]
    %v1676 = vld [vmem:[%s5 + $0x30] sm:$0xf]
    %v1677 = vld [vmem:[%s5 + $0x34] sm:$0xf]
    %v1678 = vld [vmem:[%s5 + $0x38] sm:$0xf]
    %v1679 = vld [vmem:[%s5 + $0x3c] sm:$0xf]
    %v1680 = vld [vmem:[%s5 + $0x40] sm:$0xf]
    %v1681 = vld [vmem:[%s5 + $0x44] sm:$0xf]
    %v1682 = vld [vmem:[%s5 + $0x48] sm:$0xf]
    %v1683 = vld [vmem:[%s5 + $0x4c] sm:$0xf]
    %v1684 = vld [vmem:[%s5 + $0x50] sm:$0xf]
    %v1685 = vld [vmem:[%s5 + $0x54] sm:$0xf]
    %v1686 = vld [vmem:[%s5 + $0x58] sm:$0xf]
    %v1687 = vld [vmem:[%s5 + $0x5c] sm:$0xf]
    %v1688 = vld [vmem:[%s5 + $0x60] sm:$0xf]
    %v1689 = vld [vmem:[%s5 + $0x64] sm:$0xf]
    %v1690 = vld [vmem:[%s5 + $0x68] sm:$0xf]
    %v1691 = vld [vmem:[%s5 + $0x6c] sm:$0xf]
    %v1692 = vld [vmem:[%s5 + $0x70] sm:$0xf]
    %v1693 = vld [vmem:[%s5 + $0x74] sm:$0xf]
    %v1694 = vld [vmem:[%s5 + $0x78] sm:$0xf]
    %v1695 = vld [vmem:[%s5 + $0x7c] sm:$0xf]
    %v1696 = vld [vmem:[%s6] sm:$0x1]
    %v1698 = vlaneseq
    %v1699 = vshrl.u32 %v1698, 7
    %v1700 = vsub.s32 0, %v1699
    %v1701 = vrot.slane %v1696, %v1700
    %v1735 = vunpack.c.l.b16 %v1664
    %v1736 = vunpack.c.l.b16 %v1665
    %v1737 = vunpack.c.l.b16 %v1666
    %v1738 = vunpack.c.l.b16 %v1667
    %v1739 = vunpack.c.l.b16 %v1668
    %v1740 = vunpack.c.l.b16 %v1669
    %v1741 = vunpack.c.l.b16 %v1670
    %v1742 = vunpack.c.l.b16 %v1671
    %v1743 = vunpack.c.l.b16 %v1672
    %v1744 = vunpack.c.l.b16 %v1673
    %v1745 = vunpack.c.l.b16 %v1674
    %v1746 = vunpack.c.l.b16 %v1675
    %v1747 = vunpack.c.l.b16 %v1676
    %v1748 = vunpack.c.l.b16 %v1677
    %v1749 = vunpack.c.l.b16 %v1678
    %v1750 = vunpack.c.l.b16 %v1679
    %v1751 = vunpack.c.l.b16 %v1680
    %v1752 = vunpack.c.l.b16 %v1681
    %v1753 = vunpack.c.l.b16 %v1682
    %v1754 = vunpack.c.l.b16 %v1683
    %v1755 = vunpack.c.l.b16 %v1684
    %v1756 = vunpack.c.l.b16 %v1685
    %v1757 = vunpack.c.l.b16 %v1686
    %v1758 = vunpack.c.l.b16 %v1687
    %v1759 = vunpack.c.l.b16 %v1688
    %v1760 = vunpack.c.l.b16 %v1689
    %v1761 = vunpack.c.l.b16 %v1690
    %v1762 = vunpack.c.l.b16 %v1691
    %v1763 = vunpack.c.l.b16 %v1692
    %v1764 = vunpack.c.l.b16 %v1693
    %v1765 = vunpack.c.l.b16 %v1694
    %v1766 = vunpack.c.l.b16 %v1695
    %v1767 = vpack.c.b16 %v1736, %v1735
    %v1768 = vpack.c.b16 %v1738, %v1737
    %v1769 = vpack.c.b16 %v1740, %v1739
    %v1770 = vpack.c.b16 %v1742, %v1741
    %v1771 = vpack.c.b16 %v1744, %v1743
    %v1772 = vpack.c.b16 %v1746, %v1745
    %v1773 = vpack.c.b16 %v1748, %v1747
    %v1774 = vpack.c.b16 %v1750, %v1749
    %v1775 = vpack.c.b16 %v1752, %v1751
    %v1776 = vpack.c.b16 %v1754, %v1753
    %v1777 = vpack.c.b16 %v1756, %v1755
    %v1778 = vpack.c.b16 %v1758, %v1757
    %v1779 = vpack.c.b16 %v1760, %v1759
    %v1780 = vpack.c.b16 %v1762, %v1761
    %v1781 = vpack.c.b16 %v1764, %v1763
    %v1782 = vpack.c.b16 %v1766, %v1765
    %1799 = vmatprep.subr.bf16.mxu0 0
    %1800 = vmatpush1.bf16.msra.mxu0 %v1767
    %1801 = vmatprep.subr.bf16.mxu0 0
    %1802 = vmatpush1.bf16.msra.mxu0 %v1768
    %1803 = vmatprep.subr.bf16.mxu0 0
    %1804 = vmatpush1.bf16.msra.mxu0 %v1769
    %1805 = vmatprep.subr.bf16.mxu0 0
    %1806 = vmatpush1.bf16.msra.mxu0 %v1770
    %1807 = vmatprep.subr.bf16.mxu0 0
    %1808 = vmatpush1.bf16.msra.mxu0 %v1771
    %1809 = vmatprep.subr.bf16.mxu0 0
    %1810 = vmatpush1.bf16.msra.mxu0 %v1772
    %1811 = vmatprep.subr.bf16.mxu0 0
    %1812 = vmatpush1.bf16.msra.mxu0 %v1773
    %1813 = vmatprep.subr.bf16.mxu0 0
    %1814 = vmatpush1.bf16.msra.mxu0 %v1774
    %1815 = vmatprep.subr.bf16.mxu0 0
    %1816 = vmatpush1.bf16.msra.mxu0 %v1775
    %1817 = vmatprep.subr.bf16.mxu0 0
    %1818 = vmatpush1.bf16.msra.mxu0 %v1776
    %1819 = vmatprep.subr.bf16.mxu0 0
    %1820 = vmatpush1.bf16.msra.mxu0 %v1777
    %1821 = vmatprep.subr.bf16.mxu0 0
    %1822 = vmatpush1.bf16.msra.mxu0 %v1778
    %1823 = vmatprep.subr.bf16.mxu0 0
    %1824 = vmatpush1.bf16.msra.mxu0 %v1779
    %1825 = vmatprep.subr.bf16.mxu0 0
    %1826 = vmatpush1.bf16.msra.mxu0 %v1780
    %1827 = vmatprep.subr.bf16.mxu0 0
    %1828 = vmatpush1.bf16.msra.mxu0 %v1781
    %1829 = vmatprep.subr.bf16.mxu0 0
    %1830 = vmatpush1.bf16.msra.mxu0 %v1782
    %1831 = vmatprep.mubr.bf16.mxu0 %v1663
    %1832 = vmatmul.mubr.bf16.gmra.mrb[0].mxu0 %v1662
    %v1833 = vpop.f32.mrb[0].mxu0
    %v1834 = vadd.f32 %v1701, %v1833
    %v1835 = vpop.f32.mrb[0].mxu0
    %v1836 = vpop.f32.mrb[0].mxu0
    %v1837 = vpop.f32.mrb[0].mxu0
    %1838 = vdwg.mxu0
    %v1839 = vsub.f32 0.0, %v1834
    %v1840 = vmul.f32 %v1839, 1.442695
    %v1841 = vpow.pop %v1840
    %v1842 = vadd.f32 %v1841, 1.0
    %v1843 = vrcp.pop %v1842
    %1844 = vst [vmem:[#allocation2] sm:$0xff] %v1843
    // Predicated region
    $region30: #{recsys_binary_forward.1} parent=1 // pred_check
      _
    $region31: #{recsys_binary_forward.1} parent=1 // pred_check_branch
      %1846 = sbr.rel (0) target = $region33
    $region32: #{recsys_binary_forward.1} parent=1 // pred_region
      %s1848 = ssub.s32 128, 128
      %1849 = vsyncadd [#allocation3], %s1848
      %s1851 = sshll.u32 [#allocation2], 4
      %s1852 = int_to_ptr.vmem [resolvable:$true] %s1851
      %1854 = dma.vmem_to_hbm [thread:$0]  %s1852, 128, %s7, [#allocation3]
    $region33: #{recsys_binary_forward.1} parent=1 // pred_fallthru
      _
    // Predicated region
    $region34: #{recsys_binary_forward.1} parent=1 // pred_check
      _
    $region35: #{recsys_binary_forward.1} parent=1 // pred_check_branch
      %1856 = sbr.rel (0) target = $region37
    $region36: #{recsys_binary_forward.1} parent=1 // pred_region
      %1857 = dma.done [#allocation3], 128
    $region37: #{recsys_binary_forward.1} parent=1 // pred_fallthru
      _
    %1858 = vsyncpa [#allocation3], 1

</llo_original>
